<compile_context>
chip_gen: v5e
topology: v5e:2x2
jax: 0.10.0
libtpu: 0.0.40
codegen_flags: <defaults>
</compile_context>

<pallas_src>
import jax
import jax.numpy as jnp
from jax import lax
from jax.experimental import pallas as pl
from jax.experimental.pallas import tpu as pltpu

# ---------------------------------------------------------------------------
# problem sizes
# ---------------------------------------------------------------------------
N = 2            # batch                 (17   in the original module)
CIN = 256        # in channels           (1000 in the original module)
COUT = 1         # out channels
H, W = 16, 16    # spatial               (16, 85 in the original module)
K = 8            # kernel size
PAD = K - 1
OH, OW = H + K - 1, W + K - 1
HW = H * W

NEG_SCALE = 1.648397


def _round_up(a, b):
    return (a + b - 1) // b * b


# Lane-dense flattened output layout with row stride OW. The +PAD slack keeps
# every circular-roll wraparound inside the never-written zero tail.
M2 = _round_up(OH * OW + PAD, 128)

# Static correctness guards for the circular rolls (review concern):
# wrapped reads land in [M2 - PAD*OW - PAD, M2), which must sit inside the
# zero tail [H*OW, M2); all kept outputs read sources < OH*OW <= M2.
assert M2 - PAD * OW - PAD >= H * OW
assert M2 >= OH * OW


def conv_t_act_kernel(x_ref, w_ref, o_ref, ppad_ref):
    """One grid step == one batch element (grid=(N,), batch axis 'parallel').

    x_ref   : (1, CIN, H*W) f32   raw NCHW input, spatial flattened (no padding)
    w_ref   : (K*K, CIN)    bf16  tap-major weights, row dw*K+dh = w[c,0,dh,dw]
    o_ref   : (1, 1, M2)    f32   activated output, flattened with row stride OW
    ppad_ref: (K*K, M2)     f32   scratch: matmul result scattered to OW-stride rows
    """
    # Single MXU contraction for all 64 taps over the full channel dim.
    xb = x_ref[0].astype(jnp.bfloat16)                         # (CIN, HW)
    p = jnp.dot(w_ref[...], xb,
                preferred_element_type=jnp.float32)            # (K*K, HW) f32

    # Scatter the H input rows (stride W) into the OW-stride layout. Everything
    # not written (right border cols, rows >= H, zero tail) must stay zero, so
    # re-zero each batch (cheap, and safe when the parallel batch axis is split
    # across TensorCores).
    ppad_ref[...] = jnp.zeros_like(ppad_ref)
    for h in range(H):
        ppad_ref[:, h * OW:h * OW + W] = p[:, h * W:(h + 1) * W]

    # dw-combine: rows [dw*K, dw*K+K) share the same dw tap; roll each fully
    # packed (K, M2) group right by dw (XLU slot) and sum (VPU slot).
    q = ppad_ref[0:K, :]
    for dw in range(1, K):
        q = q + pltpu.roll(ppad_ref[dw * K:(dw + 1) * K, :], shift=dw, axis=1)

    # dh-combine: row dh contributes shifted right by dh output rows (dh*OW).
    total = q[0:1, :]
    for dh in range(1, K):
        total = total + pltpu.roll(q[dh:dh + 1, :], shift=dh * OW, axis=1)

    # h2 = h1 > 0 ; h4 = where(h2, h1, 1.648397*h1) ; relu6(h4)
    act = jnp.where(total > 0, total, total * NEG_SCALE)
    o_ref[0] = jnp.clip(act, 0.0, 6.0)


def conv_transpose_relu6(x, w):
    """x: (N, CIN, H, W) f32; w: (CIN, 1, K, K) f32 (PyTorch ConvTranspose2d layout)."""
    # No padded HBM intermediate and no prep pass: a free reshape only.
    xf = x.reshape(N, CIN, HW)

    # Transposed-conv scatter taps (unflipped): W64[dw*K + dh, c] = w[c, 0, dh, dw].
    wmat = jnp.transpose(w[:, 0, :, :], (2, 1, 0)).reshape(K * K, CIN)
    wmat = wmat.astype(jnp.bfloat16)

    # VMEM budget computed from actual buffer sizes (double-buffered x block,
    # in-kernel bf16 cast temp, matmul result, tap scratch, small w/out blocks)
    # plus headroom for compiler temporaries.
    x_blk = CIN * HW * 4
    vmem_limit = (2 * x_blk                      # double-buffered f32 input block
                  + CIN * HW * 2                 # in-kernel bf16 cast temp
                  + K * K * _round_up(HW, 128) * 4   # matmul result value
                  + K * K * M2 * 4               # ppad scratch
                  + 2 * K * K * CIN * 2          # weight blocks
                  + 2 * M2 * 4                   # output blocks
                  + (16 << 20))                  # headroom
    vmem_limit = min(vmem_limit, 100 * 1024 * 1024)

    raw = pl.pallas_call(
        conv_t_act_kernel,
        out_shape=jax.ShapeDtypeStruct((N, 1, M2), jnp.float32),
        grid_spec=pltpu.PrefetchScalarGridSpec(
            num_scalar_prefetch=0,
            grid=(N,),
            in_specs=[
                # TODO(synk): if xprof shows exposed input DMA per batch, set
                # pipeline_mode=pl.Buffered(3) on this BlockSpec.
                pl.BlockSpec((1, CIN, HW), lambda n: (n, 0, 0)),
                pl.BlockSpec((K * K, CIN), lambda n: (0, 0)),
            ],
            out_specs=pl.BlockSpec((1, 1, M2), lambda n: (n, 0, 0)),
            scratch_shapes=[pltpu.VMEM((K * K, M2), jnp.float32)],
        ),
        compiler_params=pltpu.CompilerParams(
            dimension_semantics=("parallel",),
            vmem_limit_bytes=vmem_limit),
    )(xf, wmat)

    out = raw[:, 0, :OH * OW].reshape(N, OH, OW)
    return out[:, None, :, :]                         # NCHW (N, 1, OH, OW)


def reference(x, w):
    """Pure-JAX reference of the same forward pass (ConvTranspose2d == full conv
    of the zero-padded input with the spatially flipped kernel)."""
    xp = jnp.pad(x, ((0, 0), (0, 0), (PAD, PAD), (PAD, PAD)))
    wf = w[:, 0, ::-1, ::-1]                          # (CIN, K, K)
    kernel = wf[None]                                 # (1, CIN, K, K) OIHW
    h1 = lax.conv_general_dilated(
        xp, kernel, window_strides=(1, 1), padding="VALID",
        dimension_numbers=("NCHW", "OIHW", "NCHW"))
    h4 = jnp.where(h1 > 0, h1, h1 * NEG_SCALE)
    return jnp.clip(h4, 0.0, 6.0)


if __name__ == "__main__":
    key = jax.random.PRNGKey(0)
    kx, kw_key = jax.random.split(key)
    x2 = jax.random.normal(kx, (N, CIN, H, W), dtype=jnp.float32)
    # deterministic ConvTranspose2d weight, PyTorch layout (Cin, Cout, kH, kW)
    w = jax.random.normal(kw_key, (CIN, COUT, K, K), dtype=jnp.float32) * 0.05

    out = conv_transpose_relu6(x2, w)
    out = jax.block_until_ready(out)

    # compare against the reference evaluated on the same bf16-rounded operands
    # (kernel uses bf16 MXU inputs with f32 accumulation)
    xr = x2.astype(jnp.bfloat16).astype(jnp.float32)
    wr = w.astype(jnp.bfloat16).astype(jnp.float32)
    ref = reference(xr, wr)

    assert out.shape == (N, COUT, OH, OW), out.shape
    assert jnp.allclose(out, ref, atol=5e-3, rtol=5e-3), \
        float(jnp.max(jnp.abs(out - ref)))
    print("KERNEL_OK")
</pallas_src>

<mosaic_0001>
module attributes {stable_mosaic.version = 11 : i64} {
  func.func @conv_t_act_kernel(%arg0: i32, %arg1: memref<1x256x256xf32, #tpu.memory_space<vmem>>, %arg2: memref<64x256xbf16, #tpu.memory_space<vmem>>, %arg3: memref<1x1x640xf32, #tpu.memory_space<vmem>>, %arg4: memref<64x640xf32, #tpu.memory_space<vmem>>) attributes {dimension_semantics = [#tpu.dimension_semantics<parallel>], iteration_bounds = array<i64: 2>, scalar_prefetch = 0 : i64, scratch_operands = 1 : i64, tpu.core_type = #tpu.core_type<tc>, window_params = [{transform_indices = @transform_0, window_bounds = array<i64: 1, 256, 256>}, {pipeline_mode = #tpu.pipeline_mode<synchronous>, transform_indices = @transform_1, window_bounds = array<i64: 64, 256>}, {transform_indices = @transform_2, window_bounds = array<i64: 1, 1, 640>}]} {
    %c0 = arith.constant 0 : index
    %c0_0 = arith.constant 0 : index
    %c0_1 = arith.constant 0 : index
    %0 = vector.load %arg1[%c0, %c0_0, %c0_1] : memref<1x256x256xf32, #tpu.memory_space<vmem>>, vector<1x256x256xf32>
    %1 = vector.shape_cast %0 : vector<1x256x256xf32> to vector<256x256xf32>
    %2 = arith.truncf %1 : vector<256x256xf32> to vector<256x256xbf16>
    %c0_2 = arith.constant 0 : index
    %c0_3 = arith.constant 0 : index
    %3 = vector.load %arg2[%c0_2, %c0_3] : memref<64x256xbf16, #tpu.memory_space<vmem>>, vector<64x256xbf16>
    %cst = arith.constant dense<0.000000e+00> : vector<64x256xf32>
    %4 = tpu.matmul %3, %2, %cst {dimension_numbers = #tpu.dot_dimension_numbers<[1], [0], [0], [1], [0, 0, 1, 1], [], []>} : vector<64x256xbf16>, vector<256x256xbf16>, vector<64x256xf32> -> vector<64x256xf32>
    %cst_4 = arith.constant 0.000000e+00 : f32
    %5 = vector.broadcast %cst_4 : f32 to vector<64x640xf32>
    %c0_5 = arith.constant 0 : index
    %c0_6 = arith.constant 0 : index
    %6 = vector.load %arg4[%c0_5, %c0_6] : memref<64x640xf32, #tpu.memory_space<vmem>>, vector<64x640xf32>
    tpu.vector_store %arg4[%c0_5, %c0_6], %5 {strides = array<i32>} : memref<64x640xf32, #tpu.memory_space<vmem>>, vector<64x640xf32>,
    %7 = vector.extract_strided_slice %4 {offsets = [0, 0], sizes = [64, 16], strides = [1, 1]} : vector<64x256xf32> to vector<64x16xf32>
    %c0_7 = arith.constant 0 : index
    %c0_8 = arith.constant 0 : index
    %8 = vector.load %arg4[%c0_7, %c0_8] : memref<64x640xf32, #tpu.memory_space<vmem>>, vector<64x16xf32>
    tpu.vector_store %arg4[%c0_7, %c0_8], %7 {strides = array<i32>} : memref<64x640xf32, #tpu.memory_space<vmem>>, vector<64x16xf32>,
    %9 = vector.extract_strided_slice %4 {offsets = [0, 16], sizes = [64, 16], strides = [1, 1]} : vector<64x256xf32> to vector<64x16xf32>
    %c0_9 = arith.constant 0 : index
    %c23 = arith.constant 23 : index
    %10 = vector.load %arg4[%c0_9, %c23] : memref<64x640xf32, #tpu.memory_space<vmem>>, vector<64x16xf32>
    tpu.vector_store %arg4[%c0_9, %c23], %9 {strides = array<i32>} : memref<64x640xf32, #tpu.memory_space<vmem>>, vector<64x16xf32>,
    %11 = vector.extract_strided_slice %4 {offsets = [0, 32], sizes = [64, 16], strides = [1, 1]} : vector<64x256xf32> to vector<64x16xf32>
    %c0_10 = arith.constant 0 : index
    %c46 = arith.constant 46 : index
    %12 = vector.load %arg4[%c0_10, %c46] : memref<64x640xf32, #tpu.memory_space<vmem>>, vector<64x16xf32>
    tpu.vector_store %arg4[%c0_10, %c46], %11 {strides = array<i32>} : memref<64x640xf32, #tpu.memory_space<vmem>>, vector<64x16xf32>,
    %13 = vector.extract_strided_slice %4 {offsets = [0, 48], sizes = [64, 16], strides = [1, 1]} : vector<64x256xf32> to vector<64x16xf32>
    %c0_11 = arith.constant 0 : index
    %c69 = arith.constant 69 : index
    %14 = vector.load %arg4[%c0_11, %c69] : memref<64x640xf32, #tpu.memory_space<vmem>>, vector<64x16xf32>
    tpu.vector_store %arg4[%c0_11, %c69], %13 {strides = array<i32>} : memref<64x640xf32, #tpu.memory_space<vmem>>, vector<64x16xf32>,
    %15 = vector.extract_strided_slice %4 {offsets = [0, 64], sizes = [64, 16], strides = [1, 1]} : vector<64x256xf32> to vector<64x16xf32>
    %c0_12 = arith.constant 0 : index
    %c92 = arith.constant 92 : index
    %16 = vector.load %arg4[%c0_12, %c92] : memref<64x640xf32, #tpu.memory_space<vmem>>, vector<64x16xf32>
    tpu.vector_store %arg4[%c0_12, %c92], %15 {strides = array<i32>} : memref<64x640xf32, #tpu.memory_space<vmem>>, vector<64x16xf32>,
    %17 = vector.extract_strided_slice %4 {offsets = [0, 80], sizes = [64, 16], strides = [1, 1]} : vector<64x256xf32> to vector<64x16xf32>
    %c0_13 = arith.constant 0 : index
    %c115 = arith.constant 115 : index
    %18 = vector.load %arg4[%c0_13, %c115] : memref<64x640xf32, #tpu.memory_space<vmem>>, vector<64x16xf32>
    tpu.vector_store %arg4[%c0_13, %c115], %17 {strides = array<i32>} : memref<64x640xf32, #tpu.memory_space<vmem>>, vector<64x16xf32>,
    %19 = vector.extract_strided_slice %4 {offsets = [0, 96], sizes = [64, 16], strides = [1, 1]} : vector<64x256xf32> to vector<64x16xf32>
    %c0_14 = arith.constant 0 : index
    %c138 = arith.constant 138 : index
    %20 = vector.load %arg4[%c0_14, %c138] : memref<64x640xf32, #tpu.memory_space<vmem>>, vector<64x16xf32>
    tpu.vector_store %arg4[%c0_14, %c138], %19 {strides = array<i32>} : memref<64x640xf32, #tpu.memory_space<vmem>>, vector<64x16xf32>,
    %21 = vector.extract_strided_slice %4 {offsets = [0, 112], sizes = [64, 16], strides = [1, 1]} : vector<64x256xf32> to vector<64x16xf32>
    %c0_15 = arith.constant 0 : index
    %c161 = arith.constant 161 : index
    %22 = vector.load %arg4[%c0_15, %c161] : memref<64x640xf32, #tpu.memory_space<vmem>>, vector<64x16xf32>
    tpu.vector_store %arg4[%c0_15, %c161], %21 {strides = array<i32>} : memref<64x640xf32, #tpu.memory_space<vmem>>, vector<64x16xf32>,
    %23 = vector.extract_strided_slice %4 {offsets = [0, 128], sizes = [64, 16], strides = [1, 1]} : vector<64x256xf32> to vector<64x16xf32>
    %c0_16 = arith.constant 0 : index
    %c184 = arith.constant 184 : index
    %24 = vector.load %arg4[%c0_16, %c184] : memref<64x640xf32, #tpu.memory_space<vmem>>, vector<64x16xf32>
    tpu.vector_store %arg4[%c0_16, %c184], %23 {strides = array<i32>} : memref<64x640xf32, #tpu.memory_space<vmem>>, vector<64x16xf32>,
    %25 = vector.extract_strided_slice %4 {offsets = [0, 144], sizes = [64, 16], strides = [1, 1]} : vector<64x256xf32> to vector<64x16xf32>
    %c0_17 = arith.constant 0 : index
    %c207 = arith.constant 207 : index
    %26 = vector.load %arg4[%c0_17, %c207] : memref<64x640xf32, #tpu.memory_space<vmem>>, vector<64x16xf32>
    tpu.vector_store %arg4[%c0_17, %c207], %25 {strides = array<i32>} : memref<64x640xf32, #tpu.memory_space<vmem>>, vector<64x16xf32>,
    %27 = vector.extract_strided_slice %4 {offsets = [0, 160], sizes = [64, 16], strides = [1, 1]} : vector<64x256xf32> to vector<64x16xf32>
    %c0_18 = arith.constant 0 : index
    %c230 = arith.constant 230 : index
    %28 = vector.load %arg4[%c0_18, %c230] : memref<64x640xf32, #tpu.memory_space<vmem>>, vector<64x16xf32>
    tpu.vector_store %arg4[%c0_18, %c230], %27 {strides = array<i32>} : memref<64x640xf32, #tpu.memory_space<vmem>>, vector<64x16xf32>,
    %29 = vector.extract_strided_slice %4 {offsets = [0, 176], sizes = [64, 16], strides = [1, 1]} : vector<64x256xf32> to vector<64x16xf32>
    %c0_19 = arith.constant 0 : index
    %c253 = arith.constant 253 : index
    %30 = vector.load %arg4[%c0_19, %c253] : memref<64x640xf32, #tpu.memory_space<vmem>>, vector<64x16xf32>
    tpu.vector_store %arg4[%c0_19, %c253], %29 {strides = array<i32>} : memref<64x640xf32, #tpu.memory_space<vmem>>, vector<64x16xf32>,
    %31 = vector.extract_strided_slice %4 {offsets = [0, 192], sizes = [64, 16], strides = [1, 1]} : vector<64x256xf32> to vector<64x16xf32>
    %c0_20 = arith.constant 0 : index
    %c276 = arith.constant 276 : index
    %32 = vector.load %arg4[%c0_20, %c276] : memref<64x640xf32, #tpu.memory_space<vmem>>, vector<64x16xf32>
    tpu.vector_store %arg4[%c0_20, %c276], %31 {strides = array<i32>} : memref<64x640xf32, #tpu.memory_space<vmem>>, vector<64x16xf32>,
    %33 = vector.extract_strided_slice %4 {offsets = [0, 208], sizes = [64, 16], strides = [1, 1]} : vector<64x256xf32> to vector<64x16xf32>
    %c0_21 = arith.constant 0 : index
    %c299 = arith.constant 299 : index
    %34 = vector.load %arg4[%c0_21, %c299] : memref<64x640xf32, #tpu.memory_space<vmem>>, vector<64x16xf32>
    tpu.vector_store %arg4[%c0_21, %c299], %33 {strides = array<i32>} : memref<64x640xf32, #tpu.memory_space<vmem>>, vector<64x16xf32>,
    %35 = vector.extract_strided_slice %4 {offsets = [0, 224], sizes = [64, 16], strides = [1, 1]} : vector<64x256xf32> to vector<64x16xf32>
    %c0_22 = arith.constant 0 : index
    %c322 = arith.constant 322 : index
    %36 = vector.load %arg4[%c0_22, %c322] : memref<64x640xf32, #tpu.memory_space<vmem>>, vector<64x16xf32>
    tpu.vector_store %arg4[%c0_22, %c322], %35 {strides = array<i32>} : memref<64x640xf32, #tpu.memory_space<vmem>>, vector<64x16xf32>,
    %37 = vector.extract_strided_slice %4 {offsets = [0, 240], sizes = [64, 16], strides = [1, 1]} : vector<64x256xf32> to vector<64x16xf32>
    %c0_23 = arith.constant 0 : index
    %c345 = arith.constant 345 : index
    %38 = vector.load %arg4[%c0_23, %c345] : memref<64x640xf32, #tpu.memory_space<vmem>>, vector<64x16xf32>
    tpu.vector_store %arg4[%c0_23, %c345], %37 {strides = array<i32>} : memref<64x640xf32, #tpu.memory_space<vmem>>, vector<64x16xf32>,
    %c0_24 = arith.constant 0 : index
    %c0_25 = arith.constant 0 : index
    %39 = vector.load %arg4[%c0_24, %c0_25] : memref<64x640xf32, #tpu.memory_space<vmem>>, vector<8x640xf32>
    %c8 = arith.constant 8 : index
    %c0_26 = arith.constant 0 : index
    %40 = vector.load %arg4[%c8, %c0_26] : memref<64x640xf32, #tpu.memory_space<vmem>>, vector<8x640xf32>
    %c1_i32 = arith.constant 1 : i32
    %41 = tpu.dynamic_rotate %40 by %c1_i32 dim 1 : vector<8x640xf32>, i32 -> vector<8x640xf32>
    %42 = arith.addf %39, %41 : vector<8x640xf32>
    %c16 = arith.constant 16 : index
    %c0_27 = arith.constant 0 : index
    %43 = vector.load %arg4[%c16, %c0_27] : memref<64x640xf32, #tpu.memory_space<vmem>>, vector<8x640xf32>
    %c2_i32 = arith.constant 2 : i32
    %44 = tpu.dynamic_rotate %43 by %c2_i32 dim 1 : vector<8x640xf32>, i32 -> vector<8x640xf32>
    %45 = arith.addf %42, %44 : vector<8x640xf32>
    %c24 = arith.constant 24 : index
    %c0_28 = arith.constant 0 : index
    %46 = vector.load %arg4[%c24, %c0_28] : memref<64x640xf32, #tpu.memory_space<vmem>>, vector<8x640xf32>
    %c3_i32 = arith.constant 3 : i32
    %47 = tpu.dynamic_rotate %46 by %c3_i32 dim 1 : vector<8x640xf32>, i32 -> vector<8x640xf32>
    %48 = arith.addf %45, %47 : vector<8x640xf32>
    %c32 = arith.constant 32 : index
    %c0_29 = arith.constant 0 : index
    %49 = vector.load %arg4[%c32, %c0_29] : memref<64x640xf32, #tpu.memory_space<vmem>>, vector<8x640xf32>
    %c4_i32 = arith.constant 4 : i32
    %50 = tpu.dynamic_rotate %49 by %c4_i32 dim 1 : vector<8x640xf32>, i32 -> vector<8x640xf32>
    %51 = arith.addf %48, %50 : vector<8x640xf32>
    %c40 = arith.constant 40 : index
    %c0_30 = arith.constant 0 : index
    %52 = vector.load %arg4[%c40, %c0_30] : memref<64x640xf32, #tpu.memory_space<vmem>>, vector<8x640xf32>
    %c5_i32 = arith.constant 5 : i32
    %53 = tpu.dynamic_rotate %52 by %c5_i32 dim 1 : vector<8x640xf32>, i32 -> vector<8x640xf32>
    %54 = arith.addf %51, %53 : vector<8x640xf32>
    %c48 = arith.constant 48 : index
    %c0_31 = arith.constant 0 : index
    %55 = vector.load %arg4[%c48, %c0_31] : memref<64x640xf32, #tpu.memory_space<vmem>>, vector<8x640xf32>
    %c6_i32 = arith.constant 6 : i32
    %56 = tpu.dynamic_rotate %55 by %c6_i32 dim 1 : vector<8x640xf32>, i32 -> vector<8x640xf32>
    %57 = arith.addf %54, %56 : vector<8x640xf32>
    %c56 = arith.constant 56 : index
    %c0_32 = arith.constant 0 : index
    %58 = vector.load %arg4[%c56, %c0_32] : memref<64x640xf32, #tpu.memory_space<vmem>>, vector<8x640xf32>
    %c7_i32 = arith.constant 7 : i32
    %59 = tpu.dynamic_rotate %58 by %c7_i32 dim 1 : vector<8x640xf32>, i32 -> vector<8x640xf32>
    %60 = arith.addf %57, %59 : vector<8x640xf32>
    %61 = vector.extract_strided_slice %60 {offsets = [0, 0], sizes = [1, 640], strides = [1, 1]} : vector<8x640xf32> to vector<1x640xf32>
    %62 = vector.extract_strided_slice %60 {offsets = [1, 0], sizes = [1, 640], strides = [1, 1]} : vector<8x640xf32> to vector<1x640xf32>
    %c23_i32 = arith.constant 23 : i32
    %63 = tpu.dynamic_rotate %62 by %c23_i32 dim 1 : vector<1x640xf32>, i32 -> vector<1x640xf32>
    %64 = arith.addf %61, %63 : vector<1x640xf32>
    %65 = vector.extract_strided_slice %60 {offsets = [2, 0], sizes = [1, 640], strides = [1, 1]} : vector<8x640xf32> to vector<1x640xf32>
    %c46_i32 = arith.constant 46 : i32
    %66 = tpu.dynamic_rotate %65 by %c46_i32 dim 1 : vector<1x640xf32>, i32 -> vector<1x640xf32>
    %67 = arith.addf %64, %66 : vector<1x640xf32>
    %68 = vector.extract_strided_slice %60 {offsets = [3, 0], sizes = [1, 640], strides = [1, 1]} : vector<8x640xf32> to vector<1x640xf32>
    %c69_i32 = arith.constant 69 : i32
    %69 = tpu.dynamic_rotate %68 by %c69_i32 dim 1 : vector<1x640xf32>, i32 -> vector<1x640xf32>
    %70 = arith.addf %67, %69 : vector<1x640xf32>
    %71 = vector.extract_strided_slice %60 {offsets = [4, 0], sizes = [1, 640], strides = [1, 1]} : vector<8x640xf32> to vector<1x640xf32>
    %c92_i32 = arith.constant 92 : i32
    %72 = tpu.dynamic_rotate %71 by %c92_i32 dim 1 : vector<1x640xf32>, i32 -> vector<1x640xf32>
    %73 = arith.addf %70, %72 : vector<1x640xf32>
    %74 = vector.extract_strided_slice %60 {offsets = [5, 0], sizes = [1, 640], strides = [1, 1]} : vector<8x640xf32> to vector<1x640xf32>
    %c115_i32 = arith.constant 115 : i32
    %75 = tpu.dynamic_rotate %74 by %c115_i32 dim 1 : vector<1x640xf32>, i32 -> vector<1x640xf32>
    %76 = arith.addf %73, %75 : vector<1x640xf32>
    %77 = vector.extract_strided_slice %60 {offsets = [6, 0], sizes = [1, 640], strides = [1, 1]} : vector<8x640xf32> to vector<1x640xf32>
    %c138_i32 = arith.constant 138 : i32
    %78 = tpu.dynamic_rotate %77 by %c138_i32 dim 1 : vector<1x640xf32>, i32 -> vector<1x640xf32>
    %79 = arith.addf %76, %78 : vector<1x640xf32>
    %80 = vector.extract_strided_slice %60 {offsets = [7, 0], sizes = [1, 640], strides = [1, 1]} : vector<8x640xf32> to vector<1x640xf32>
    %c161_i32 = arith.constant 161 : i32
    %81 = tpu.dynamic_rotate %80 by %c161_i32 dim 1 : vector<1x640xf32>, i32 -> vector<1x640xf32>
    %82 = arith.addf %79, %81 : vector<1x640xf32>
    %cst_33 = arith.constant 0.000000e+00 : f32
    %83 = vector.broadcast %cst_33 : f32 to vector<1x640xf32>
    %84 = arith.cmpf ogt, %82, %83 : vector<1x640xf32>
    %cst_34 = arith.constant 1.64839697 : f32
    %85 = vector.broadcast %cst_34 : f32 to vector<1x640xf32>
    %86 = arith.mulf %82, %85 : vector<1x640xf32>
    %87 = arith.select %84, %82, %86 : vector<1x640xi1>, vector<1x640xf32>
    %cst_35 = arith.constant 0.000000e+00 : f32
    %cst_36 = arith.constant 6.000000e+00 : f32
    %88 = vector.broadcast %cst_35 : f32 to vector<1x640xf32>
    %89 = arith.maximumf %88, %87 : vector<1x640xf32>
    %90 = vector.broadcast %cst_36 : f32 to vector<1x640xf32>
    %91 = arith.minimumf %90, %89 : vector<1x640xf32>
    %c0_37 = arith.constant 0 : index
    %c0_38 = arith.constant 0 : index
    %c0_39 = arith.constant 0 : index
    %92 = vector.load %arg3[%c0_37, %c0_38, %c0_39] : memref<1x1x640xf32, #tpu.memory_space<vmem>>, vector<1x1x640xf32>
    %93 = vector.shape_cast %92 : vector<1x1x640xf32> to vector<1x640xf32>
    %94 = vector.shape_cast %91 : vector<1x640xf32> to vector<1x1x640xf32>
    tpu.vector_store %arg3[%c0_37, %c0_38, %c0_39], %94 {strides = array<i32>} : memref<1x1x640xf32, #tpu.memory_space<vmem>>, vector<1x1x640xf32>,
    return
  }
  func.func @transform_0(%arg0: i32) -> (i32, i32, i32) {
    %c0_i32 = arith.constant 0 : i32
    %c0_i32_0 = arith.constant 0 : i32
    %c0_i32_1 = arith.constant 0 : i32
    return %arg0, %c0_i32, %c0_i32_0 : i32, i32, i32
  }
  func.func @transform_1(%arg0: i32) -> (i32, i32) {
    %c0_i32 = arith.constant 0 : i32
    %c0_i32_0 = arith.constant 0 : i32
    %c0_i32_1 = arith.constant 0 : i32
    return %c0_i32, %c0_i32_0 : i32, i32
  }
  func.func @transform_2(%arg0: i32) -> (i32, i32, i32) {
    %c0_i32 = arith.constant 0 : i32
    %c0_i32_0 = arith.constant 0 : i32
    %c0_i32_1 = arith.constant 0 : i32
    return %arg0, %c0_i32, %c0_i32_0 : i32, i32, i32
  }
}

</mosaic_0001>

<llo_original>
// kernel: tpu_custom_call.1
$region0: #{tpu_custom_call.1}
  #allocation0 [shape = 'u32[]', space=smem, size = 0x4, offset = 0x4, fixed_abs, tag = 'smem constant byte address 0x4 - core index']
  #allocation1 [shape = 'u32[72,128]{1,0:T(1,128)}', space=vmem, size = 0x9000, scoped, tag = 'internal scratch']
  #allocation2 [shape = 'f32[64,640]{1,0:T(8,128)}', space=vmem, size = 0x28000, scoped, tag = 'scratch operand']
  %s0 = inlined_call_operand.hbm [shape: f32[2,256,256], index: 0, kind: input, shape index: {}]
  %s1 = inlined_call_operand.hbm [shape: bf16[64,256], index: 1, kind: input, shape index: {}]
  %s2 = inlined_call_operand.hbm [shape: f32[2,1,640], index: 2, kind: output, shape index: {}]
  %s3 = sld [smem:[#allocation0]]
  $region49: #{tpu_custom_call.1} parent=0
    _
  %s5 = ssub.s32 1, %s3
  %s6 = scalar_select 0, %s5, %s3
  $region1: #{tpu_custom_call.1} parent=0
    #allocation3 [shape = 'u8[524288]{0}', space=vmem, size = 0x80000, scoped, tag = 'input window, operand 0']
    #allocation4 [shape = 's32[2]{0}', space=sflag, size = 0x8, scoped, tag = 'scoped memory for tpu_custom_call.1']
    #allocation5 [shape = 's32[2]{0}', space=sflag, size = 0x8, scoped, tag = 'scoped memory for tpu_custom_call.1']
    #allocation6 [shape = 'u8[32768]{0}', space=vmem, size = 0x8000, scoped, tag = 'input window, operand 1, single buffered']
    #allocation7 [shape = 's32[1]{0}', space=sflag, size = 0x4, scoped, tag = 'scoped memory for tpu_custom_call.1']
    #allocation8 [shape = 'u8[5120]{0}', space=vmem, size = 0x1400, scoped, tag = 'output window, operand 0']
    %7 = vsyncpa [#allocation4], 0
    %s8 = scalar_lea.sflag [#allocation4], 1
    %9 = vsyncpa %s8, 0
    %10 = vsyncpa [#allocation7], 0
    %11 = vsyncpa [#allocation5], 0
    %s12 = scalar_lea.sflag [#allocation5], 1
    %13 = vsyncpa %s12, 0
    loop: start=0, step=1, limit=4
    $region2: #{tpu_custom_call.1} parent=1 // loop_pre_header
      _
    $region3: #{tpu_custom_call.1} parent=1 // loop_header
      %s15 = sphi 0, %s19
      %p16 = scmp.ge.s32.totalorder %s15, 4
      %s25 = sphi 0, %s27
      %s28 = sphi 0, %s25
      %s29 = sphi 0, %s28
      %s45 = sphi 0, %s29
      %s49 = sphi 0, %s49
      %s51 = sphi 0, %s49
      %s52 = sphi 0, %s51
      %s66 = sphi 0, %s52
      %s72 = sphi 0, %s74
      %s75 = sphi 0, %s72
      %s76 = sphi 0, %s75
      %s92 = sphi 0, %s76
    $region4: #{tpu_custom_call.1} parent=1 // loop_header_branch
      %18 = sbr.rel (%p16) target = $region8
    $region5: #{tpu_custom_call.1} parent=1 // loop_body
      %s20 = ssub.s32 %s15, 1
      %s21 = ssub.s32 %s15, 2
      %s22 = sadd.s32 %s15, 1
      %s23 = ssub.s32 %s15, %s22
      %p24 = scmp.eq.s32.totalorder %s23, 0
      %s26 = sadd.s32 %s25, 1
      %s27 = scalar_select %p24, %s25, %s26
      %p30 = pneg %p24
      %p31 = scmp.eq.s32.totalorder %s15, 1
      %p32 = por %p30, %p31
      %p33 = scmp.ne.s32.totalorder %s25, %s28
      %p34 = scmp.eq.s32.totalorder %s15, 0
      %p35 = por %p33, %p34
      %p36 = scmp.ne.s32.totalorder %s25, %s28
      %p37 = scmp.eq.s32.totalorder %s20, 1
      %p38 = por %p36, %p37
      %p39 = scmp.ne.s32.totalorder %s28, %s29
      %p40 = scmp.eq.s32.totalorder %s20, 0
      %p41 = por %p39, %p40
      %p42 = scmp.ne.s32.totalorder %s28, %s29
      %p43 = scmp.eq.s32.totalorder %s21, 1
      %p44 = por %p42, %p43
      %p46 = scmp.ne.s32.totalorder %s29, %s45
      %p47 = scmp.eq.s32.totalorder %s21, 0
      %p48 = por %p46, %p47
      %s50 = sadd.s32 %s49, 1
      %p53 = scmp.eq.s32.totalorder %s15, 1
      %p54 = scmp.ne.s32.totalorder %s49, %s51
      %p55 = scmp.eq.s32.totalorder %s15, 0
      %p56 = por %p54, %p55
      %p57 = scmp.ne.s32.totalorder %s49, %s51
      %p58 = scmp.eq.s32.totalorder %s20, 1
      %p59 = por %p57, %p58
      %p60 = scmp.ne.s32.totalorder %s51, %s52
      %p61 = scmp.eq.s32.totalorder %s20, 0
      %p62 = por %p60, %p61
      %p63 = scmp.ne.s32.totalorder %s51, %s52
      %p64 = scmp.eq.s32.totalorder %s21, 1
      %p65 = por %p63, %p64
      %p67 = scmp.ne.s32.totalorder %s52, %s66
      %p68 = scmp.eq.s32.totalorder %s21, 0
      %p69 = por %p67, %p68
      %s70 = ssub.s32 %s15, %s22
      %p71 = scmp.eq.s32.totalorder %s70, 0
      %s73 = sadd.s32 %s72, 1
      %s74 = scalar_select %p71, %s72, %s73
      %p77 = pneg %p71
      %p78 = scmp.eq.s32.totalorder %s15, 1
      %p79 = por %p77, %p78
      %p80 = scmp.ne.s32.totalorder %s72, %s75
      %p81 = scmp.eq.s32.totalorder %s15, 0
      %p82 = por %p80, %p81
      %p83 = scmp.ne.s32.totalorder %s72, %s75
      %p84 = scmp.eq.s32.totalorder %s20, 1
      %p85 = por %p83, %p84
      %p86 = scmp.ne.s32.totalorder %s75, %s76
      %p87 = scmp.eq.s32.totalorder %s20, 0
      %p88 = por %p86, %p87
      %p89 = scmp.ne.s32.totalorder %s75, %s76
      %p90 = scmp.eq.s32.totalorder %s21, 1
      %p91 = por %p89, %p90
      %p93 = scmp.ne.s32.totalorder %s76, %s92
      %p94 = scmp.eq.s32.totalorder %s21, 0
      %p95 = por %p93, %p94
      %p96 = scmp.le.s32.totalorder 1, %s15
      %p97 = scmp.lt.s32.totalorder %s15, 3
      %p98 = pnand %p96, %p97
      %p99 = pneg %p98
      // Predicated region
      $region9: #{tpu_custom_call.1} parent=5 // pred_check
        _
      $region10: #{tpu_custom_call.1} parent=5 // pred_check_branch
        %101 = sbr.rel (%p98) target = $region12
      $region11: #{tpu_custom_call.1} parent=5 // pred_region
        %s102 = ssub.s32 %s15, 1
        // Predicated region
        $region13: #{tpu_custom_call.1} parent=11 // pred_check
          %p103 = pneg %p62
        $region14: #{tpu_custom_call.1} parent=11 // pred_check_branch
          %105 = sbr.rel (%p103) target = $region16
        $region15: #{tpu_custom_call.1} parent=11 // pred_region
          %107 = vsyncadd [#allocation7], 0
          %s108 = sshll.u32 %s1, 4
          %s109 = int_to_ptr.hbm [resolvable:$true] %s108
          %s110 = sshll.u32 [#allocation6], 4
          %s111 = int_to_ptr.vmem [resolvable:$true] %s110
          %116 = dma.hbm_to_vmem [thread:$0]  %s109, 1024, %s111, [#allocation7], 128, 128, 8
        $region16: #{tpu_custom_call.1} parent=11 // pred_fallthru
          _
      $region12: #{tpu_custom_call.1} parent=5 // pred_fallthru
        _
      %p117 = scmp.lt.s32.totalorder %s15, 2
      // Predicated region
      $region17: #{tpu_custom_call.1} parent=5 // pred_check
        %p118 = pneg %p117
      $region18: #{tpu_custom_call.1} parent=5 // pred_check_branch
        %120 = sbr.rel (%p118) target = $region20
      $region19: #{tpu_custom_call.1} parent=5 // pred_region
        // Predicated region
        $region21: #{tpu_custom_call.1} parent=19 // pred_check
          %p121 = pneg %p35
        $region22: #{tpu_custom_call.1} parent=19 // pred_check_branch
          %123 = sbr.rel (%p121) target = $region24
        $region23: #{tpu_custom_call.1} parent=19 // pred_region
          %s124 = sand.u32 %s25, 1
          %s125 = scalar_lea.sflag [#allocation4], %s124
          %s126 = sand.u32 %s25, 1
          %s127 = smul.addr %s126, 512
          %s128 = scalar_lea.vmem [#allocation3], %s127
          %130 = vsyncadd %s125, 0
          %s131 = smul.addr %s15, 64
          %s132 = smul.addr %s131, 8
          %s133 = scalar_lea.hbm %s0, %s132
          %s134 = sshll.u32 %s133, 4
          %s135 = int_to_ptr.hbm [resolvable:$true] %s134
          %s136 = sshll.u32 %s128, 4
          %s137 = int_to_ptr.vmem [resolvable:$true] %s136
          %142 = dma.hbm_to_vmem [thread:$0]  %s135, 8192, %s137, %s125, 256, 256, 16
        $region24: #{tpu_custom_call.1} parent=19 // pred_fallthru
          _
      $region20: #{tpu_custom_call.1} parent=5 // pred_fallthru
        _
      %p143 = scmp.le.s32.totalorder 1, %s15
      %p144 = scmp.lt.s32.totalorder %s15, 3
      %p145 = pnand %p143, %p144
      %p146 = pneg %p145
      // Predicated region
      $region25: #{tpu_custom_call.1} parent=5 // pred_check
        _
      $region26: #{tpu_custom_call.1} parent=5 // pred_check_branch
        %148 = sbr.rel (%p145) target = $region28
      $region27: #{tpu_custom_call.1} parent=5 // pred_region
        %s149 = ssub.s32 %s15, 1
        %s150 = sand.u32 %s28, 1
        %s151 = scalar_lea.sflag [#allocation4], %s150
        %s152 = sand.u32 %s28, 1
        %s153 = smul.addr %s152, 512
        %s154 = scalar_lea.vmem [#allocation3], %s153
        // Predicated region
        $region29: #{tpu_custom_call.1} parent=27 // pred_check
          %p155 = pneg %p41
        $region30: #{tpu_custom_call.1} parent=27 // pred_check_branch
          %157 = sbr.rel (%p155) target = $region32
        $region31: #{tpu_custom_call.1} parent=27 // pred_region
          %159 = dma.done %s151, 8192
        $region32: #{tpu_custom_call.1} parent=27 // pred_fallthru
          _
        // Predicated region
        $region33: #{tpu_custom_call.1} parent=27 // pred_check
          %p160 = pneg %p62
        $region34: #{tpu_custom_call.1} parent=27 // pred_check_branch
          %162 = sbr.rel (%p160) target = $region36
        $region35: #{tpu_custom_call.1} parent=27 // pred_region
          %164 = dma.done [#allocation7], 1024
        $region36: #{tpu_custom_call.1} parent=27 // pred_fallthru
          _
        %s165 = sand.u32 %s28, 1
        %s166 = scalar_lea.sflag [#allocation4], %s165
        %s167 = sand.u32 %s28, 1
        %s168 = smul.addr %s167, 512
        %s169 = scalar_lea.vmem [#allocation3], %s168
        %p170 = pneg %p41
        %p171 = pneg %p38
        %p172 = pneg %p62
        %p173 = pneg %p59
        %p174 = pneg %p88
        %p175 = pneg %p85
        %s176 = sand.u32 %s75, 1
        %s177 = scalar_lea.sflag [#allocation5], %s176
        %s178 = sand.u32 %s75, 1
        %s179 = smul.addr %s178, 5
        %s180 = scalar_lea.vmem [#allocation8], %s179
        %v181 = vld [vmem:[%s154] sm:$0xff]
        %v182 = vld [vmem:[%s154 + $0x8] sm:$0xff]
        %v183 = vld [vmem:[%s154 + $0x10] sm:$0xff]
        %v184 = vld [vmem:[%s154 + $0x18] sm:$0xff]
        %v185 = vld [vmem:[%s154 + $0x20] sm:$0xff]
        %v186 = vld [vmem:[%s154 + $0x28] sm:$0xff]
        %v187 = vld [vmem:[%s154 + $0x30] sm:$0xff]
        %v188 = vld [vmem:[%s154 + $0x38] sm:$0xff]
        %v189 = vld [vmem:[%s154 + $0x40] sm:$0xff]
        %v190 = vld [vmem:[%s154 + $0x48] sm:$0xff]
        %v191 = vld [vmem:[%s154 + $0x50] sm:$0xff]
        %v192 = vld [vmem:[%s154 + $0x58] sm:$0xff]
        %v193 = vld [vmem:[%s154 + $0x60] sm:$0xff]
        %v194 = vld [vmem:[%s154 + $0x68] sm:$0xff]
        %v195 = vld [vmem:[%s154 + $0x70] sm:$0xff]
        %v196 = vld [vmem:[%s154 + $0x78] sm:$0xff]
        %v197 = vld [vmem:[%s154 + $0x80] sm:$0xff]
        %v198 = vld [vmem:[%s154 + $0x88] sm:$0xff]
        %v199 = vld [vmem:[%s154 + $0x90] sm:$0xff]
        %v200 = vld [vmem:[%s154 + $0x98] sm:$0xff]
        %v201 = vld [vmem:[%s154 + $0xa0] sm:$0xff]
        %v202 = vld [vmem:[%s154 + $0xa8] sm:$0xff]
        %v203 = vld [vmem:[%s154 + $0xb0] sm:$0xff]
        %v204 = vld [vmem:[%s154 + $0xb8] sm:$0xff]
        %v205 = vld [vmem:[%s154 + $0xc0] sm:$0xff]
        %v206 = vld [vmem:[%s154 + $0xc8] sm:$0xff]
        %v207 = vld [vmem:[%s154 + $0xd0] sm:$0xff]
        %v208 = vld [vmem:[%s154 + $0xd8] sm:$0xff]
        %v209 = vld [vmem:[%s154 + $0xe0] sm:$0xff]
        %v210 = vld [vmem:[%s154 + $0xe8] sm:$0xff]
        %v211 = vld [vmem:[%s154 + $0xf0] sm:$0xff]
        %v212 = vld [vmem:[%s154 + $0xf8] sm:$0xff]
        %v213 = vld [vmem:[%s154 + $0x100] sm:$0xff]
        %v214 = vld [vmem:[%s154 + $0x108] sm:$0xff]
        %v215 = vld [vmem:[%s154 + $0x110] sm:$0xff]
        %v216 = vld [vmem:[%s154 + $0x118] sm:$0xff]
        %v217 = vld [vmem:[%s154 + $0x120] sm:$0xff]
        %v218 = vld [vmem:[%s154 + $0x128] sm:$0xff]
        %v219 = vld [vmem:[%s154 + $0x130] sm:$0xff]
        %v220 = vld [vmem:[%s154 + $0x138] sm:$0xff]
        %v221 = vld [vmem:[%s154 + $0x140] sm:$0xff]
        %v222 = vld [vmem:[%s154 + $0x148] sm:$0xff]
        %v223 = vld [vmem:[%s154 + $0x150] sm:$0xff]
        %v224 = vld [vmem:[%s154 + $0x158] sm:$0xff]
        %v225 = vld [vmem:[%s154 + $0x160] sm:$0xff]
        %v226 = vld [vmem:[%s154 + $0x168] sm:$0xff]
        %v227 = vld [vmem:[%s154 + $0x170] sm:$0xff]
        %v228 = vld [vmem:[%s154 + $0x178] sm:$0xff]
        %v229 = vld [vmem:[%s154 + $0x180] sm:$0xff]
        %v230 = vld [vmem:[%s154 + $0x188] sm:$0xff]
        %v231 = vld [vmem:[%s154 + $0x190] sm:$0xff]
        %v232 = vld [vmem:[%s154 + $0x198] sm:$0xff]
        %v233 = vld [vmem:[%s154 + $0x1a0] sm:$0xff]
        %v234 = vld [vmem:[%s154 + $0x1a8] sm:$0xff]
        %v235 = vld [vmem:[%s154 + $0x1b0] sm:$0xff]
        %v236 = vld [vmem:[%s154 + $0x1b8] sm:$0xff]
        %v237 = vld [vmem:[%s154 + $0x1c0] sm:$0xff]
        %v238 = vld [vmem:[%s154 + $0x1c8] sm:$0xff]
        %v239 = vld [vmem:[%s154 + $0x1d0] sm:$0xff]
        %v240 = vld [vmem:[%s154 + $0x1d8] sm:$0xff]
        %v241 = vld [vmem:[%s154 + $0x1e0] sm:$0xff]
        %v242 = vld [vmem:[%s154 + $0x1e8] sm:$0xff]
        %v243 = vld [vmem:[%s154 + $0x1f0] sm:$0xff]
        %v244 = vld [vmem:[%s154 + $0x1f8] sm:$0xff]
        %v245 = vpack.c.bf16 %v183, %v181
        %v246 = vpack.c.bf16 %v184, %v182
        %v247 = vpack.c.bf16 %v187, %v185
        %v248 = vpack.c.bf16 %v188, %v186
        %v249 = vpack.c.bf16 %v191, %v189
        %v250 = vpack.c.bf16 %v192, %v190
        %v251 = vpack.c.bf16 %v195, %v193
        %v252 = vpack.c.bf16 %v196, %v194
        %v253 = vpack.c.bf16 %v199, %v197
        %v254 = vpack.c.bf16 %v200, %v198
        %v255 = vpack.c.bf16 %v203, %v201
        %v256 = vpack.c.bf16 %v204, %v202
        %v257 = vpack.c.bf16 %v207, %v205
        %v258 = vpack.c.bf16 %v208, %v206
        %v259 = vpack.c.bf16 %v211, %v209
        %v260 = vpack.c.bf16 %v212, %v210
        %v261 = vpack.c.bf16 %v215, %v213
        %v262 = vpack.c.bf16 %v216, %v214
        %v263 = vpack.c.bf16 %v219, %v217
        %v264 = vpack.c.bf16 %v220, %v218
        %v265 = vpack.c.bf16 %v223, %v221
        %v266 = vpack.c.bf16 %v224, %v222
        %v267 = vpack.c.bf16 %v227, %v225
        %v268 = vpack.c.bf16 %v228, %v226
        %v269 = vpack.c.bf16 %v231, %v229
        %v270 = vpack.c.bf16 %v232, %v230
        %v271 = vpack.c.bf16 %v235, %v233
        %v272 = vpack.c.bf16 %v236, %v234
        %v273 = vpack.c.bf16 %v239, %v237
        %v274 = vpack.c.bf16 %v240, %v238
        %v275 = vpack.c.bf16 %v243, %v241
        %v276 = vpack.c.bf16 %v244, %v242
        %v277 = vld [vmem:[#allocation6] sm:$0xff]
        %v278 = vld [vmem:[#allocation6 + $0x8] sm:$0xff]
        %v279 = vld [vmem:[#allocation6 + $0x10] sm:$0xff]
        %v280 = vld [vmem:[#allocation6 + $0x18] sm:$0xff]
        %v281 = vld [vmem:[#allocation6 + $0x20] sm:$0xff]
        %v282 = vld [vmem:[#allocation6 + $0x28] sm:$0xff]
        %v283 = vld [vmem:[#allocation6 + $0x30] sm:$0xff]
        %v284 = vld [vmem:[#allocation6 + $0x38] sm:$0xff]
        %v293 = vunpack.c.l.b16 %v277
        %v294 = vunpack.c.h.b16 %v277
        %v295 = vunpack.c.l.b16 %v278
        %v296 = vunpack.c.h.b16 %v278
        %v297 = vunpack.c.l.b16 %v279
        %v298 = vunpack.c.h.b16 %v279
        %v299 = vunpack.c.l.b16 %v280
        %v300 = vunpack.c.h.b16 %v280
        %v301 = vunpack.c.l.b16 %v281
        %v302 = vunpack.c.h.b16 %v281
        %v303 = vunpack.c.l.b16 %v282
        %v304 = vunpack.c.h.b16 %v282
        %v305 = vunpack.c.l.b16 %v283
        %v306 = vunpack.c.h.b16 %v283
        %v307 = vunpack.c.l.b16 %v284
        %v308 = vunpack.c.h.b16 %v284
        %v309 = vpack.c.b16 %v295, %v293
        %v310 = vpack.c.b16 %v296, %v294
        %v311 = vpack.c.b16 %v299, %v297
        %v312 = vpack.c.b16 %v300, %v298
        %v313 = vpack.c.b16 %v303, %v301
        %v314 = vpack.c.b16 %v304, %v302
        %v315 = vpack.c.b16 %v307, %v305
        %v316 = vpack.c.b16 %v308, %v306
        %325 = vmatpush.bf16.msra.mxu0 %v259
        %326 = vmatpush.bf16.msra.mxu0 %v257
        %327 = vmatpush.bf16.msra.mxu0 %v255
        %328 = vmatpush.bf16.msra.mxu0 %v253
        %329 = vmatpush.bf16.msra.mxu0 %v251
        %330 = vmatpush.bf16.msra.mxu0 %v249
        %331 = vmatpush.bf16.msra.mxu0 %v247
        %332 = vmatpush.bf16.msra.mxu0 %v245
        %333 = vmatmul.bf16.gmra.mxu0 %v309
        %v334 = vpop.f32.mrf.mxu0
        %v335 = vadd.f32 0.0, %v334
        %v336 = vpop.f32.mrf.mxu0
        %v337 = vadd.f32 0.0, %v336
        %338 = vmatmul.bf16.gmra.mxu0 %v311
        %v339 = vpop.f32.mrf.mxu0
        %v340 = vadd.f32 0.0, %v339
        %v341 = vpop.f32.mrf.mxu0
        %v342 = vadd.f32 0.0, %v341
        %343 = vmatmul.bf16.gmra.mxu0 %v313
        %v344 = vpop.f32.mrf.mxu0
        %v345 = vadd.f32 0.0, %v344
        %v346 = vpop.f32.mrf.mxu0
        %v347 = vadd.f32 0.0, %v346
        %348 = vmatmul.bf16.gmra.mxu0 %v315
        %v349 = vpop.f32.mrf.mxu0
        %v350 = vadd.f32 0.0, %v349
        %v351 = vpop.f32.mrf.mxu0
        %v352 = vadd.f32 0.0, %v351
        %353 = vdwg.mxu0
        %354 = vmatpush.bf16.msra.mxu0 %v275
        %355 = vmatpush.bf16.msra.mxu0 %v273
        %356 = vmatpush.bf16.msra.mxu0 %v271
        %357 = vmatpush.bf16.msra.mxu0 %v269
        %358 = vmatpush.bf16.msra.mxu0 %v267
        %359 = vmatpush.bf16.msra.mxu0 %v265
        %360 = vmatpush.bf16.msra.mxu0 %v263
        %361 = vmatpush.bf16.msra.mxu0 %v261
        %362 = vmatmul.bf16.gmra.mxu0 %v310
        %v363 = vpop.f32.mrf.mxu0
        %v364 = vadd.f32 %v335, %v363
        %v365 = vpop.f32.mrf.mxu0
        %v366 = vadd.f32 %v337, %v365
        %367 = vmatmul.bf16.gmra.mxu0 %v312
        %v368 = vpop.f32.mrf.mxu0
        %v369 = vadd.f32 %v340, %v368
        %v370 = vpop.f32.mrf.mxu0
        %v371 = vadd.f32 %v342, %v370
        %372 = vmatmul.bf16.gmra.mxu0 %v314
        %v373 = vpop.f32.mrf.mxu0
        %v374 = vadd.f32 %v345, %v373
        %v375 = vpop.f32.mrf.mxu0
        %v376 = vadd.f32 %v347, %v375
        %377 = vmatmul.bf16.gmra.mxu0 %v316
        %v378 = vpop.f32.mrf.mxu0
        %v379 = vadd.f32 %v350, %v378
        %v380 = vpop.f32.mrf.mxu0
        %v381 = vadd.f32 %v352, %v380
        %382 = vdwg.mxu0
        %383 = vmatpush.bf16.msra.mxu0 %v260
        %384 = vmatpush.bf16.msra.mxu0 %v258
        %385 = vmatpush.bf16.msra.mxu0 %v256
        %386 = vmatpush.bf16.msra.mxu0 %v254
        %387 = vmatpush.bf16.msra.mxu0 %v252
        %388 = vmatpush.bf16.msra.mxu0 %v250
        %389 = vmatpush.bf16.msra.mxu0 %v248
        %390 = vmatpush.bf16.msra.mxu0 %v246
        %391 = vmatmul.bf16.gmra.mxu0 %v309
        %v392 = vpop.f32.mrf.mxu0
        %v393 = vadd.f32 0.0, %v392
        %v394 = vpop.f32.mrf.mxu0
        %v395 = vadd.f32 0.0, %v394
        %396 = vmatmul.bf16.gmra.mxu0 %v311
        %v397 = vpop.f32.mrf.mxu0
        %v398 = vadd.f32 0.0, %v397
        %v399 = vpop.f32.mrf.mxu0
        %v400 = vadd.f32 0.0, %v399
        %401 = vmatmul.bf16.gmra.mxu0 %v313
        %v402 = vpop.f32.mrf.mxu0
        %v403 = vadd.f32 0.0, %v402
        %v404 = vpop.f32.mrf.mxu0
        %v405 = vadd.f32 0.0, %v404
        %406 = vmatmul.bf16.gmra.mxu0 %v315
        %v407 = vpop.f32.mrf.mxu0
        %v408 = vadd.f32 0.0, %v407
        %v409 = vpop.f32.mrf.mxu0
        %v410 = vadd.f32 0.0, %v409
        %411 = vdwg.mxu0
        %412 = vmatpush.bf16.msra.mxu0 %v276
        %413 = vmatpush.bf16.msra.mxu0 %v274
        %414 = vmatpush.bf16.msra.mxu0 %v272
        %415 = vmatpush.bf16.msra.mxu0 %v270
        %416 = vmatpush.bf16.msra.mxu0 %v268
        %417 = vmatpush.bf16.msra.mxu0 %v266
        %418 = vmatpush.bf16.msra.mxu0 %v264
        %419 = vmatpush.bf16.msra.mxu0 %v262
        %420 = vmatmul.bf16.gmra.mxu0 %v310
        %v421 = vpop.f32.mrf.mxu0
        %v422 = vadd.f32 %v393, %v421
        %v423 = vpop.f32.mrf.mxu0
        %v424 = vadd.f32 %v395, %v423
        %425 = vmatmul.bf16.gmra.mxu0 %v312
        %v426 = vpop.f32.mrf.mxu0
        %v427 = vadd.f32 %v398, %v426
        %v428 = vpop.f32.mrf.mxu0
        %v429 = vadd.f32 %v400, %v428
        %430 = vmatmul.bf16.gmra.mxu0 %v314
        %v431 = vpop.f32.mrf.mxu0
        %v432 = vadd.f32 %v403, %v431
        %v433 = vpop.f32.mrf.mxu0
        %v434 = vadd.f32 %v405, %v433
        %435 = vmatmul.bf16.gmra.mxu0 %v316
        %v436 = vpop.f32.mrf.mxu0
        %v437 = vadd.f32 %v408, %v436
        %v438 = vpop.f32.mrf.mxu0
        %v439 = vadd.f32 %v410, %v438
        %440 = vdwg.mxu0
        %441 = vst [vmem:[#allocation2] sm:$0xff] 0.0
        %442 = vst [vmem:[#allocation2 + $0x8] sm:$0xff] 0.0
        %443 = vst [vmem:[#allocation2 + $0x10] sm:$0xff] 0.0
        %444 = vst [vmem:[#allocation2 + $0x18] sm:$0xff] 0.0
        %445 = vst [vmem:[#allocation2 + $0x20] sm:$0xff] 0.0
        %446 = vst [vmem:[#allocation2 + $0x28] sm:$0xff] 0.0
        %447 = vst [vmem:[#allocation2 + $0x30] sm:$0xff] 0.0
        %448 = vst [vmem:[#allocation2 + $0x38] sm:$0xff] 0.0
        %449 = vst [vmem:[#allocation2 + $0x40] sm:$0xff] 0.0
        %450 = vst [vmem:[#allocation2 + $0x48] sm:$0xff] 0.0
        %451 = vst [vmem:[#allocation2 + $0x50] sm:$0xff] 0.0
        %452 = vst [vmem:[#allocation2 + $0x58] sm:$0xff] 0.0
        %453 = vst [vmem:[#allocation2 + $0x60] sm:$0xff] 0.0
        %454 = vst [vmem:[#allocation2 + $0x68] sm:$0xff] 0.0
        %455 = vst [vmem:[#allocation2 + $0x70] sm:$0xff] 0.0
        %456 = vst [vmem:[#allocation2 + $0x78] sm:$0xff] 0.0
        %457 = vst [vmem:[#allocation2 + $0x80] sm:$0xff] 0.0
        %458 = vst [vmem:[#allocation2 + $0x88] sm:$0xff] 0.0
        %459 = vst [vmem:[#allocation2 + $0x90] sm:$0xff] 0.0
        %460 = vst [vmem:[#allocation2 + $0x98] sm:$0xff] 0.0
        %461 = vst [vmem:[#allocation2 + $0xa0] sm:$0xff] 0.0
        %462 = vst [vmem:[#allocation2 + $0xa8] sm:$0xff] 0.0
        %463 = vst [vmem:[#allocation2 + $0xb0] sm:$0xff] 0.0
        %464 = vst [vmem:[#allocation2 + $0xb8] sm:$0xff] 0.0
        %465 = vst [vmem:[#allocation2 + $0xc0] sm:$0xff] 0.0
        %466 = vst [vmem:[#allocation2 + $0xc8] sm:$0xff] 0.0
        %467 = vst [vmem:[#allocation2 + $0xd0] sm:$0xff] 0.0
        %468 = vst [vmem:[#allocation2 + $0xd8] sm:$0xff] 0.0
        %469 = vst [vmem:[#allocation2 + $0xe0] sm:$0xff] 0.0
        %470 = vst [vmem:[#allocation2 + $0xe8] sm:$0xff] 0.0
        %471 = vst [vmem:[#allocation2 + $0xf0] sm:$0xff] 0.0
        %472 = vst [vmem:[#allocation2 + $0xf8] sm:$0xff] 0.0
        %473 = vst [vmem:[#allocation2 + $0x100] sm:$0xff] 0.0
        %474 = vst [vmem:[#allocation2 + $0x108] sm:$0xff] 0.0
        %475 = vst [vmem:[#allocation2 + $0x110] sm:$0xff] 0.0
        %476 = vst [vmem:[#allocation2 + $0x118] sm:$0xff] 0.0
        %477 = vst [vmem:[#allocation2 + $0x120] sm:$0xff] 0.0
        %478 = vst [vmem:[#allocation2 + $0x128] sm:$0xff] 0.0
        %479 = vst [vmem:[#allocation2 + $0x130] sm:$0xff] 0.0
        %480 = vst [vmem:[#allocation2 + $0x138] sm:$0xff] 0.0
        %vm481 = vcmask 130048
        %482 = vst.msk [vmem:[#allocation2] sm:$0xff] %vm481, %v364
        %483 = vst.msk [vmem:[#allocation2 + $0x28] sm:$0xff] %vm481, %v366
        %484 = vst.msk [vmem:[#allocation2 + $0x50] sm:$0xff] %vm481, %v369
        %485 = vst.msk [vmem:[#allocation2 + $0x78] sm:$0xff] %vm481, %v371
        %486 = vst.msk [vmem:[#allocation2 + $0xa0] sm:$0xff] %vm481, %v374
        %487 = vst.msk [vmem:[#allocation2 + $0xc8] sm:$0xff] %vm481, %v376
        %488 = vst.msk [vmem:[#allocation2 + $0xf0] sm:$0xff] %vm481, %v379
        %489 = vst.msk [vmem:[#allocation2 + $0x118] sm:$0xff] %vm481, %v381
        %498 = vrot.lane.b32.xlu0 %v364, 7
        %v499 = vpop.permute.xlu0 %498
        %500 = vrot.lane.b32.xlu0 %v366, 7
        %v501 = vpop.permute.xlu0 %500
        %502 = vrot.lane.b32.xlu0 %v369, 7
        %v503 = vpop.permute.xlu0 %502
        %504 = vrot.lane.b32.xlu0 %v371, 7
        %v505 = vpop.permute.xlu0 %504
        %506 = vrot.lane.b32.xlu0 %v374, 7
        %v507 = vpop.permute.xlu0 %506
        %508 = vrot.lane.b32.xlu0 %v376, 7
        %v509 = vpop.permute.xlu0 %508
        %510 = vrot.lane.b32.xlu0 %v379, 7
        %v511 = vpop.permute.xlu0 %510
        %512 = vrot.lane.b32.xlu0 %v381, 7
        %v513 = vpop.permute.xlu0 %512
        %vm522 = vcmask 318648
        %523 = vst.msk [vmem:[#allocation2] sm:$0xff] %vm522, %v499
        %524 = vst.msk [vmem:[#allocation2 + $0x28] sm:$0xff] %vm522, %v501
        %525 = vst.msk [vmem:[#allocation2 + $0x50] sm:$0xff] %vm522, %v503
        %526 = vst.msk [vmem:[#allocation2 + $0x78] sm:$0xff] %vm522, %v505
        %527 = vst.msk [vmem:[#allocation2 + $0xa0] sm:$0xff] %vm522, %v507
        %528 = vst.msk [vmem:[#allocation2 + $0xc8] sm:$0xff] %vm522, %v509
        %529 = vst.msk [vmem:[#allocation2 + $0xf0] sm:$0xff] %vm522, %v511
        %530 = vst.msk [vmem:[#allocation2 + $0x118] sm:$0xff] %vm522, %v513
        %531 = vrot.lane.b32.xlu0 %v364, 14
        %v532 = vpop.permute.xlu0 %531
        %533 = vrot.lane.b32.xlu0 %v366, 14
        %v534 = vpop.permute.xlu0 %533
        %535 = vrot.lane.b32.xlu0 %v369, 14
        %v536 = vpop.permute.xlu0 %535
        %537 = vrot.lane.b32.xlu0 %v371, 14
        %v538 = vpop.permute.xlu0 %537
        %539 = vrot.lane.b32.xlu0 %v374, 14
        %v540 = vpop.permute.xlu0 %539
        %541 = vrot.lane.b32.xlu0 %v376, 14
        %v542 = vpop.permute.xlu0 %541
        %543 = vrot.lane.b32.xlu0 %v379, 14
        %v544 = vpop.permute.xlu0 %543
        %545 = vrot.lane.b32.xlu0 %v381, 14
        %v546 = vpop.permute.xlu0 %545
        %vm555 = vcmask 507248
        %556 = vst.msk [vmem:[#allocation2] sm:$0xff] %vm555, %v532
        %557 = vst.msk [vmem:[#allocation2 + $0x28] sm:$0xff] %vm555, %v534
        %558 = vst.msk [vmem:[#allocation2 + $0x50] sm:$0xff] %vm555, %v536
        %559 = vst.msk [vmem:[#allocation2 + $0x78] sm:$0xff] %vm555, %v538
        %560 = vst.msk [vmem:[#allocation2 + $0xa0] sm:$0xff] %vm555, %v540
        %561 = vst.msk [vmem:[#allocation2 + $0xc8] sm:$0xff] %vm555, %v542
        %562 = vst.msk [vmem:[#allocation2 + $0xf0] sm:$0xff] %vm555, %v544
        %563 = vst.msk [vmem:[#allocation2 + $0x118] sm:$0xff] %vm555, %v546
        %564 = vrot.lane.b32.xlu0 %v364, 21
        %v565 = vpop.permute.xlu0 %564
        %566 = vrot.lane.b32.xlu0 %v366, 21
        %v567 = vpop.permute.xlu0 %566
        %568 = vrot.lane.b32.xlu0 %v369, 21
        %v569 = vpop.permute.xlu0 %568
        %570 = vrot.lane.b32.xlu0 %v371, 21
        %v571 = vpop.permute.xlu0 %570
        %572 = vrot.lane.b32.xlu0 %v374, 21
        %v573 = vpop.permute.xlu0 %572
        %574 = vrot.lane.b32.xlu0 %v376, 21
        %v575 = vpop.permute.xlu0 %574
        %576 = vrot.lane.b32.xlu0 %v379, 21
        %v577 = vpop.permute.xlu0 %576
        %578 = vrot.lane.b32.xlu0 %v381, 21
        %v579 = vpop.permute.xlu0 %578
        %vm588 = vcmask 695848
        %589 = vst.msk [vmem:[#allocation2] sm:$0xff] %vm588, %v565
        %590 = vst.msk [vmem:[#allocation2 + $0x28] sm:$0xff] %vm588, %v567
        %591 = vst.msk [vmem:[#allocation2 + $0x50] sm:$0xff] %vm588, %v569
        %592 = vst.msk [vmem:[#allocation2 + $0x78] sm:$0xff] %vm588, %v571
        %593 = vst.msk [vmem:[#allocation2 + $0xa0] sm:$0xff] %vm588, %v573
        %594 = vst.msk [vmem:[#allocation2 + $0xc8] sm:$0xff] %vm588, %v575
        %595 = vst.msk [vmem:[#allocation2 + $0xf0] sm:$0xff] %vm588, %v577
        %596 = vst.msk [vmem:[#allocation2 + $0x118] sm:$0xff] %vm588, %v579
        %597 = vrot.lane.b32.xlu0 %v364, 28
        %v598 = vpop.permute.xlu0 %597
        %599 = vrot.lane.b32.xlu0 %v366, 28
        %v600 = vpop.permute.xlu0 %599
        %601 = vrot.lane.b32.xlu0 %v369, 28
        %v602 = vpop.permute.xlu0 %601
        %603 = vrot.lane.b32.xlu0 %v371, 28
        %v604 = vpop.permute.xlu0 %603
        %605 = vrot.lane.b32.xlu0 %v374, 28
        %v606 = vpop.permute.xlu0 %605
        %607 = vrot.lane.b32.xlu0 %v376, 28
        %v608 = vpop.permute.xlu0 %607
        %609 = vrot.lane.b32.xlu0 %v379, 28
        %v610 = vpop.permute.xlu0 %609
        %611 = vrot.lane.b32.xlu0 %v381, 28
        %v612 = vpop.permute.xlu0 %611
        %vm621 = vcmask 884448
        %622 = vst.msk [vmem:[#allocation2] sm:$0xff] %vm621, %v598
        %623 = vst.msk [vmem:[#allocation2 + $0x28] sm:$0xff] %vm621, %v600
        %624 = vst.msk [vmem:[#allocation2 + $0x50] sm:$0xff] %vm621, %v602
        %625 = vst.msk [vmem:[#allocation2 + $0x78] sm:$0xff] %vm621, %v604
        %626 = vst.msk [vmem:[#allocation2 + $0xa0] sm:$0xff] %vm621, %v606
        %627 = vst.msk [vmem:[#allocation2 + $0xc8] sm:$0xff] %vm621, %v608
        %628 = vst.msk [vmem:[#allocation2 + $0xf0] sm:$0xff] %vm621, %v610
        %629 = vst.msk [vmem:[#allocation2 + $0x118] sm:$0xff] %vm621, %v612
        %630 = vrot.lane.b32.xlu0 %v364, 35
        %v631 = vpop.permute.xlu0 %630
        %632 = vrot.lane.b32.xlu0 %v366, 35
        %v633 = vpop.permute.xlu0 %632
        %634 = vrot.lane.b32.xlu0 %v369, 35
        %v635 = vpop.permute.xlu0 %634
        %636 = vrot.lane.b32.xlu0 %v371, 35
        %v637 = vpop.permute.xlu0 %636
        %638 = vrot.lane.b32.xlu0 %v374, 35
        %v639 = vpop.permute.xlu0 %638
        %640 = vrot.lane.b32.xlu0 %v376, 35
        %v641 = vpop.permute.xlu0 %640
        %642 = vrot.lane.b32.xlu0 %v379, 35
        %v643 = vpop.permute.xlu0 %642
        %644 = vrot.lane.b32.xlu0 %v381, 35
        %v645 = vpop.permute.xlu0 %644
        %vm654 = vcmask 1048472
        %655 = vst.msk [vmem:[#allocation2] sm:$0xff] %vm654, %v631
        %vm656 = vcmask 23552
        %657 = vst.msk [vmem:[#allocation2 + $0x8] sm:$0xff] %vm656, %v631
        %658 = vst.msk [vmem:[#allocation2 + $0x28] sm:$0xff] %vm654, %v633
        %659 = vst.msk [vmem:[#allocation2 + $0x30] sm:$0xff] %vm656, %v633
        %660 = vst.msk [vmem:[#allocation2 + $0x50] sm:$0xff] %vm654, %v635
        %661 = vst.msk [vmem:[#allocation2 + $0x58] sm:$0xff] %vm656, %v635
        %662 = vst.msk [vmem:[#allocation2 + $0x78] sm:$0xff] %vm654, %v637
        %663 = vst.msk [vmem:[#allocation2 + $0x80] sm:$0xff] %vm656, %v637
        %664 = vst.msk [vmem:[#allocation2 + $0xa0] sm:$0xff] %vm654, %v639
        %665 = vst.msk [vmem:[#allocation2 + $0xa8] sm:$0xff] %vm656, %v639
        %666 = vst.msk [vmem:[#allocation2 + $0xc8] sm:$0xff] %vm654, %v641
        %667 = vst.msk [vmem:[#allocation2 + $0xd0] sm:$0xff] %vm656, %v641
        %668 = vst.msk [vmem:[#allocation2 + $0xf0] sm:$0xff] %vm654, %v643
        %669 = vst.msk [vmem:[#allocation2 + $0xf8] sm:$0xff] %vm656, %v643
        %670 = vst.msk [vmem:[#allocation2 + $0x118] sm:$0xff] %vm654, %v645
        %671 = vst.msk [vmem:[#allocation2 + $0x120] sm:$0xff] %vm656, %v645
        %672 = vrot.lane.b32.xlu0 %v364, 42
        %v673 = vpop.permute.xlu0 %672
        %674 = vrot.lane.b32.xlu0 %v366, 42
        %v675 = vpop.permute.xlu0 %674
        %676 = vrot.lane.b32.xlu0 %v369, 42
        %v677 = vpop.permute.xlu0 %676
        %678 = vrot.lane.b32.xlu0 %v371, 42
        %v679 = vpop.permute.xlu0 %678
        %680 = vrot.lane.b32.xlu0 %v374, 42
        %v681 = vpop.permute.xlu0 %680
        %682 = vrot.lane.b32.xlu0 %v376, 42
        %v683 = vpop.permute.xlu0 %682
        %684 = vrot.lane.b32.xlu0 %v379, 42
        %v685 = vpop.permute.xlu0 %684
        %686 = vrot.lane.b32.xlu0 %v381, 42
        %v687 = vpop.permute.xlu0 %686
        %vm696 = vcmask 212048
        %697 = vst.msk [vmem:[#allocation2 + $0x8] sm:$0xff] %vm696, %v673
        %698 = vst.msk [vmem:[#allocation2 + $0x30] sm:$0xff] %vm696, %v675
        %699 = vst.msk [vmem:[#allocation2 + $0x58] sm:$0xff] %vm696, %v677
        %700 = vst.msk [vmem:[#allocation2 + $0x80] sm:$0xff] %vm696, %v679
        %701 = vst.msk [vmem:[#allocation2 + $0xa8] sm:$0xff] %vm696, %v681
        %702 = vst.msk [vmem:[#allocation2 + $0xd0] sm:$0xff] %vm696, %v683
        %703 = vst.msk [vmem:[#allocation2 + $0xf8] sm:$0xff] %vm696, %v685
        %704 = vst.msk [vmem:[#allocation2 + $0x120] sm:$0xff] %vm696, %v687
        %705 = vrot.lane.b32.xlu0 %v364, 49
        %v706 = vpop.permute.xlu0 %705
        %707 = vrot.lane.b32.xlu0 %v366, 49
        %v708 = vpop.permute.xlu0 %707
        %709 = vrot.lane.b32.xlu0 %v369, 49
        %v710 = vpop.permute.xlu0 %709
        %711 = vrot.lane.b32.xlu0 %v371, 49
        %v712 = vpop.permute.xlu0 %711
        %713 = vrot.lane.b32.xlu0 %v374, 49
        %v714 = vpop.permute.xlu0 %713
        %715 = vrot.lane.b32.xlu0 %v376, 49
        %v716 = vpop.permute.xlu0 %715
        %717 = vrot.lane.b32.xlu0 %v379, 49
        %v718 = vpop.permute.xlu0 %717
        %719 = vrot.lane.b32.xlu0 %v381, 49
        %v720 = vpop.permute.xlu0 %719
        %vm729 = vcmask 400648
        %730 = vst.msk [vmem:[#allocation2 + $0x8] sm:$0xff] %vm729, %v706
        %731 = vst.msk [vmem:[#allocation2 + $0x30] sm:$0xff] %vm729, %v708
        %732 = vst.msk [vmem:[#allocation2 + $0x58] sm:$0xff] %vm729, %v710
        %733 = vst.msk [vmem:[#allocation2 + $0x80] sm:$0xff] %vm729, %v712
        %734 = vst.msk [vmem:[#allocation2 + $0xa8] sm:$0xff] %vm729, %v714
        %735 = vst.msk [vmem:[#allocation2 + $0xd0] sm:$0xff] %vm729, %v716
        %736 = vst.msk [vmem:[#allocation2 + $0xf8] sm:$0xff] %vm729, %v718
        %737 = vst.msk [vmem:[#allocation2 + $0x120] sm:$0xff] %vm729, %v720
        %746 = vrot.lane.b32.xlu0 %v422, 56
        %v747 = vpop.permute.xlu0 %746
        %748 = vrot.lane.b32.xlu0 %v424, 56
        %v749 = vpop.permute.xlu0 %748
        %750 = vrot.lane.b32.xlu0 %v427, 56
        %v751 = vpop.permute.xlu0 %750
        %752 = vrot.lane.b32.xlu0 %v429, 56
        %v753 = vpop.permute.xlu0 %752
        %754 = vrot.lane.b32.xlu0 %v432, 56
        %v755 = vpop.permute.xlu0 %754
        %756 = vrot.lane.b32.xlu0 %v434, 56
        %v757 = vpop.permute.xlu0 %756
        %758 = vrot.lane.b32.xlu0 %v437, 56
        %v759 = vpop.permute.xlu0 %758
        %760 = vrot.lane.b32.xlu0 %v439, 56
        %v761 = vpop.permute.xlu0 %760
        %vm770 = vcmask 589248
        %771 = vst.msk [vmem:[#allocation2 + $0x8] sm:$0xff] %vm770, %v747
        %772 = vst.msk [vmem:[#allocation2 + $0x30] sm:$0xff] %vm770, %v749
        %773 = vst.msk [vmem:[#allocation2 + $0x58] sm:$0xff] %vm770, %v751
        %774 = vst.msk [vmem:[#allocation2 + $0x80] sm:$0xff] %vm770, %v753
        %775 = vst.msk [vmem:[#allocation2 + $0xa8] sm:$0xff] %vm770, %v755
        %776 = vst.msk [vmem:[#allocation2 + $0xd0] sm:$0xff] %vm770, %v757
        %777 = vst.msk [vmem:[#allocation2 + $0xf8] sm:$0xff] %vm770, %v759
        %778 = vst.msk [vmem:[#allocation2 + $0x120] sm:$0xff] %vm770, %v761
        %779 = vrot.lane.b32.xlu0 %v422, 63
        %v780 = vpop.permute.xlu0 %779
        %781 = vrot.lane.b32.xlu0 %v424, 63
        %v782 = vpop.permute.xlu0 %781
        %783 = vrot.lane.b32.xlu0 %v427, 63
        %v784 = vpop.permute.xlu0 %783
        %785 = vrot.lane.b32.xlu0 %v429, 63
        %v786 = vpop.permute.xlu0 %785
        %787 = vrot.lane.b32.xlu0 %v432, 63
        %v788 = vpop.permute.xlu0 %787
        %789 = vrot.lane.b32.xlu0 %v434, 63
        %v790 = vpop.permute.xlu0 %789
        %791 = vrot.lane.b32.xlu0 %v437, 63
        %v792 = vpop.permute.xlu0 %791
        %793 = vrot.lane.b32.xlu0 %v439, 63
        %v794 = vpop.permute.xlu0 %793
        %vm803 = vcmask 777848
        %804 = vst.msk [vmem:[#allocation2 + $0x8] sm:$0xff] %vm803, %v780
        %805 = vst.msk [vmem:[#allocation2 + $0x30] sm:$0xff] %vm803, %v782
        %806 = vst.msk [vmem:[#allocation2 + $0x58] sm:$0xff] %vm803, %v784
        %807 = vst.msk [vmem:[#allocation2 + $0x80] sm:$0xff] %vm803, %v786
        %808 = vst.msk [vmem:[#allocation2 + $0xa8] sm:$0xff] %vm803, %v788
        %809 = vst.msk [vmem:[#allocation2 + $0xd0] sm:$0xff] %vm803, %v790
        %810 = vst.msk [vmem:[#allocation2 + $0xf8] sm:$0xff] %vm803, %v792
        %811 = vst.msk [vmem:[#allocation2 + $0x120] sm:$0xff] %vm803, %v794
        %812 = vrot.lane.b32.xlu0 %v422, 70
        %v813 = vpop.permute.xlu0 %812
        %814 = vrot.lane.b32.xlu0 %v424, 70
        %v815 = vpop.permute.xlu0 %814
        %816 = vrot.lane.b32.xlu0 %v427, 70
        %v817 = vpop.permute.xlu0 %816
        %818 = vrot.lane.b32.xlu0 %v429, 70
        %v819 = vpop.permute.xlu0 %818
        %820 = vrot.lane.b32.xlu0 %v432, 70
        %v821 = vpop.permute.xlu0 %820
        %822 = vrot.lane.b32.xlu0 %v434, 70
        %v823 = vpop.permute.xlu0 %822
        %824 = vrot.lane.b32.xlu0 %v437, 70
        %v825 = vpop.permute.xlu0 %824
        %826 = vrot.lane.b32.xlu0 %v439, 70
        %v827 = vpop.permute.xlu0 %826
        %vm836 = vcmask 966448
        %837 = vst.msk [vmem:[#allocation2 + $0x8] sm:$0xff] %vm836, %v813
        %838 = vst.msk [vmem:[#allocation2 + $0x30] sm:$0xff] %vm836, %v815
        %839 = vst.msk [vmem:[#allocation2 + $0x58] sm:$0xff] %vm836, %v817
        %840 = vst.msk [vmem:[#allocation2 + $0x80] sm:$0xff] %vm836, %v819
        %841 = vst.msk [vmem:[#allocation2 + $0xa8] sm:$0xff] %vm836, %v821
        %842 = vst.msk [vmem:[#allocation2 + $0xd0] sm:$0xff] %vm836, %v823
        %843 = vst.msk [vmem:[#allocation2 + $0xf8] sm:$0xff] %vm836, %v825
        %844 = vst.msk [vmem:[#allocation2 + $0x120] sm:$0xff] %vm836, %v827
        %845 = vrot.lane.b32.xlu0 %v422, 77
        %v846 = vpop.permute.xlu0 %845
        %847 = vrot.lane.b32.xlu0 %v424, 77
        %v848 = vpop.permute.xlu0 %847
        %849 = vrot.lane.b32.xlu0 %v427, 77
        %v850 = vpop.permute.xlu0 %849
        %851 = vrot.lane.b32.xlu0 %v429, 77
        %v852 = vpop.permute.xlu0 %851
        %853 = vrot.lane.b32.xlu0 %v432, 77
        %v854 = vpop.permute.xlu0 %853
        %855 = vrot.lane.b32.xlu0 %v434, 77
        %v856 = vpop.permute.xlu0 %855
        %857 = vrot.lane.b32.xlu0 %v437, 77
        %v858 = vpop.permute.xlu0 %857
        %859 = vrot.lane.b32.xlu0 %v439, 77
        %v860 = vpop.permute.xlu0 %859
        %vm869 = vcmask 1048552
        %870 = vst.msk [vmem:[#allocation2 + $0x8] sm:$0xff] %vm869, %v846
        %vm871 = vcmask 105472
        %872 = vst.msk [vmem:[#allocation2 + $0x10] sm:$0xff] %vm871, %v846
        %873 = vst.msk [vmem:[#allocation2 + $0x30] sm:$0xff] %vm869, %v848
        %874 = vst.msk [vmem:[#allocation2 + $0x38] sm:$0xff] %vm871, %v848
        %875 = vst.msk [vmem:[#allocation2 + $0x58] sm:$0xff] %vm869, %v850
        %876 = vst.msk [vmem:[#allocation2 + $0x60] sm:$0xff] %vm871, %v850
        %877 = vst.msk [vmem:[#allocation2 + $0x80] sm:$0xff] %vm869, %v852
        %878 = vst.msk [vmem:[#allocation2 + $0x88] sm:$0xff] %vm871, %v852
        %879 = vst.msk [vmem:[#allocation2 + $0xa8] sm:$0xff] %vm869, %v854
        %880 = vst.msk [vmem:[#allocation2 + $0xb0] sm:$0xff] %vm871, %v854
        %881 = vst.msk [vmem:[#allocation2 + $0xd0] sm:$0xff] %vm869, %v856
        %882 = vst.msk [vmem:[#allocation2 + $0xd8] sm:$0xff] %vm871, %v856
        %883 = vst.msk [vmem:[#allocation2 + $0xf8] sm:$0xff] %vm869, %v858
        %884 = vst.msk [vmem:[#allocation2 + $0x100] sm:$0xff] %vm871, %v858
        %885 = vst.msk [vmem:[#allocation2 + $0x120] sm:$0xff] %vm869, %v860
        %886 = vst.msk [vmem:[#allocation2 + $0x128] sm:$0xff] %vm871, %v860
        %887 = vrot.lane.b32.xlu0 %v422, 84
        %v888 = vpop.permute.xlu0 %887
        %889 = vrot.lane.b32.xlu0 %v424, 84
        %v890 = vpop.permute.xlu0 %889
        %891 = vrot.lane.b32.xlu0 %v427, 84
        %v892 = vpop.permute.xlu0 %891
        %893 = vrot.lane.b32.xlu0 %v429, 84
        %v894 = vpop.permute.xlu0 %893
        %895 = vrot.lane.b32.xlu0 %v432, 84
        %v896 = vpop.permute.xlu0 %895
        %897 = vrot.lane.b32.xlu0 %v434, 84
        %v898 = vpop.permute.xlu0 %897
        %899 = vrot.lane.b32.xlu0 %v437, 84
        %v900 = vpop.permute.xlu0 %899
        %901 = vrot.lane.b32.xlu0 %v439, 84
        %v902 = vpop.permute.xlu0 %901
        %vm911 = vcmask 294048
        %912 = vst.msk [vmem:[#allocation2 + $0x10] sm:$0xff] %vm911, %v888
        %913 = vst.msk [vmem:[#allocation2 + $0x38] sm:$0xff] %vm911, %v890
        %914 = vst.msk [vmem:[#allocation2 + $0x60] sm:$0xff] %vm911, %v892
        %915 = vst.msk [vmem:[#allocation2 + $0x88] sm:$0xff] %vm911, %v894
        %916 = vst.msk [vmem:[#allocation2 + $0xb0] sm:$0xff] %vm911, %v896
        %917 = vst.msk [vmem:[#allocation2 + $0xd8] sm:$0xff] %vm911, %v898
        %918 = vst.msk [vmem:[#allocation2 + $0x100] sm:$0xff] %vm911, %v900
        %919 = vst.msk [vmem:[#allocation2 + $0x128] sm:$0xff] %vm911, %v902
        %920 = vrot.lane.b32.xlu0 %v422, 91
        %v921 = vpop.permute.xlu0 %920
        %922 = vrot.lane.b32.xlu0 %v424, 91
        %v923 = vpop.permute.xlu0 %922
        %924 = vrot.lane.b32.xlu0 %v427, 91
        %v925 = vpop.permute.xlu0 %924
        %926 = vrot.lane.b32.xlu0 %v429, 91
        %v927 = vpop.permute.xlu0 %926
        %928 = vrot.lane.b32.xlu0 %v432, 91
        %v929 = vpop.permute.xlu0 %928
        %930 = vrot.lane.b32.xlu0 %v434, 91
        %v931 = vpop.permute.xlu0 %930
        %932 = vrot.lane.b32.xlu0 %v437, 91
        %v933 = vpop.permute.xlu0 %932
        %934 = vrot.lane.b32.xlu0 %v439, 91
        %v935 = vpop.permute.xlu0 %934
        %vm944 = vcmask 482648
        %945 = vst.msk [vmem:[#allocation2 + $0x10] sm:$0xff] %vm944, %v921
        %946 = vst.msk [vmem:[#allocation2 + $0x38] sm:$0xff] %vm944, %v923
        %947 = vst.msk [vmem:[#allocation2 + $0x60] sm:$0xff] %vm944, %v925
        %948 = vst.msk [vmem:[#allocation2 + $0x88] sm:$0xff] %vm944, %v927
        %949 = vst.msk [vmem:[#allocation2 + $0xb0] sm:$0xff] %vm944, %v929
        %950 = vst.msk [vmem:[#allocation2 + $0xd8] sm:$0xff] %vm944, %v931
        %951 = vst.msk [vmem:[#allocation2 + $0x100] sm:$0xff] %vm944, %v933
        %952 = vst.msk [vmem:[#allocation2 + $0x128] sm:$0xff] %vm944, %v935
        %953 = vrot.lane.b32.xlu0 %v422, 98
        %v954 = vpop.permute.xlu0 %953
        %955 = vrot.lane.b32.xlu0 %v424, 98
        %v956 = vpop.permute.xlu0 %955
        %957 = vrot.lane.b32.xlu0 %v427, 98
        %v958 = vpop.permute.xlu0 %957
        %959 = vrot.lane.b32.xlu0 %v429, 98
        %v960 = vpop.permute.xlu0 %959
        %961 = vrot.lane.b32.xlu0 %v432, 98
        %v962 = vpop.permute.xlu0 %961
        %963 = vrot.lane.b32.xlu0 %v434, 98
        %v964 = vpop.permute.xlu0 %963
        %965 = vrot.lane.b32.xlu0 %v437, 98
        %v966 = vpop.permute.xlu0 %965
        %967 = vrot.lane.b32.xlu0 %v439, 98
        %v968 = vpop.permute.xlu0 %967
        %vm977 = vcmask 671248
        %978 = vst.msk [vmem:[#allocation2 + $0x10] sm:$0xff] %vm977, %v954
        %979 = vst.msk [vmem:[#allocation2 + $0x38] sm:$0xff] %vm977, %v956
        %980 = vst.msk [vmem:[#allocation2 + $0x60] sm:$0xff] %vm977, %v958
        %981 = vst.msk [vmem:[#allocation2 + $0x88] sm:$0xff] %vm977, %v960
        %982 = vst.msk [vmem:[#allocation2 + $0xb0] sm:$0xff] %vm977, %v962
        %983 = vst.msk [vmem:[#allocation2 + $0xd8] sm:$0xff] %vm977, %v964
        %984 = vst.msk [vmem:[#allocation2 + $0x100] sm:$0xff] %vm977, %v966
        %985 = vst.msk [vmem:[#allocation2 + $0x128] sm:$0xff] %vm977, %v968
        %986 = vrot.lane.b32.xlu0 %v422, 105
        %v987 = vpop.permute.xlu0 %986
        %988 = vrot.lane.b32.xlu0 %v424, 105
        %v989 = vpop.permute.xlu0 %988
        %990 = vrot.lane.b32.xlu0 %v427, 105
        %v991 = vpop.permute.xlu0 %990
        %992 = vrot.lane.b32.xlu0 %v429, 105
        %v993 = vpop.permute.xlu0 %992
        %994 = vrot.lane.b32.xlu0 %v432, 105
        %v995 = vpop.permute.xlu0 %994
        %996 = vrot.lane.b32.xlu0 %v434, 105
        %v997 = vpop.permute.xlu0 %996
        %998 = vrot.lane.b32.xlu0 %v437, 105
        %v999 = vpop.permute.xlu0 %998
        %1000 = vrot.lane.b32.xlu0 %v439, 105
        %v1001 = vpop.permute.xlu0 %1000
        %vm1010 = vcmask 859848
        %1011 = vst.msk [vmem:[#allocation2 + $0x10] sm:$0xff] %vm1010, %v987
        %1012 = vst.msk [vmem:[#allocation2 + $0x38] sm:$0xff] %vm1010, %v989
        %1013 = vst.msk [vmem:[#allocation2 + $0x60] sm:$0xff] %vm1010, %v991
        %1014 = vst.msk [vmem:[#allocation2 + $0x88] sm:$0xff] %vm1010, %v993
        %1015 = vst.msk [vmem:[#allocation2 + $0xb0] sm:$0xff] %vm1010, %v995
        %1016 = vst.msk [vmem:[#allocation2 + $0xd8] sm:$0xff] %vm1010, %v997
        %1017 = vst.msk [vmem:[#allocation2 + $0x100] sm:$0xff] %vm1010, %v999
        %1018 = vst.msk [vmem:[#allocation2 + $0x128] sm:$0xff] %vm1010, %v1001
        %v1019 = vld [vmem:[#allocation2] sm:$0xff]
        %v1020 = vld [vmem:[#allocation2 + $0x8] sm:$0xff]
        %v1021 = vld [vmem:[#allocation2 + $0x10] sm:$0xff]
        %v1022 = vld [vmem:[#allocation2 + $0x18] sm:$0xff]
        %v1023 = vld [vmem:[#allocation2 + $0x20] sm:$0xff]
        %v1024 = vld [vmem:[#allocation2 + $0x28] sm:$0xff]
        %v1025 = vld [vmem:[#allocation2 + $0x30] sm:$0xff]
        %v1026 = vld [vmem:[#allocation2 + $0x38] sm:$0xff]
        %v1027 = vld [vmem:[#allocation2 + $0x40] sm:$0xff]
        %v1028 = vld [vmem:[#allocation2 + $0x48] sm:$0xff]
        %1029 = vrot.lane.b32.xlu0 %v1024, 1
        %v1030 = vpop.permute.xlu0 %1029
        %1031 = vrot.lane.b32.xlu0 %v1025, 1
        %v1032 = vpop.permute.xlu0 %1031
        %1033 = vrot.lane.b32.xlu0 %v1026, 1
        %v1034 = vpop.permute.xlu0 %1033
        %1035 = vrot.lane.b32.xlu0 %v1027, 1
        %v1036 = vpop.permute.xlu0 %1035
        %1037 = vrot.lane.b32.xlu0 %v1028, 1
        %v1038 = vpop.permute.xlu0 %1037
        %v1039 = vlaneseq
        %v1040 = vand.u32 %v1039, 127
        %vm1041 = vcmp.lt.s32.totalorder %v1040, 1
        %v1042 = vsel %vm1041, %v1036, %v1038
        %v1043 = vsel %vm1041, %v1034, %v1036
        %v1044 = vsel %vm1041, %v1032, %v1034
        %v1045 = vsel %vm1041, %v1030, %v1032
        %v1046 = vsel %vm1041, %v1038, %v1030
        %v1047 = vadd.f32 %v1019, %v1046
        %v1048 = vadd.f32 %v1020, %v1045
        %v1049 = vadd.f32 %v1021, %v1044
        %v1050 = vadd.f32 %v1022, %v1043
        %v1051 = vadd.f32 %v1023, %v1042
        %v1052 = vld [vmem:[#allocation2 + $0x50] sm:$0xff]
        %v1053 = vld [vmem:[#allocation2 + $0x58] sm:$0xff]
        %v1054 = vld [vmem:[#allocation2 + $0x60] sm:$0xff]
        %v1055 = vld [vmem:[#allocation2 + $0x68] sm:$0xff]
        %v1056 = vld [vmem:[#allocation2 + $0x70] sm:$0xff]
        %1057 = vrot.lane.b32.xlu0 %v1052, 2
        %v1058 = vpop.permute.xlu0 %1057
        %1059 = vrot.lane.b32.xlu0 %v1053, 2
        %v1060 = vpop.permute.xlu0 %1059
        %1061 = vrot.lane.b32.xlu0 %v1054, 2
        %v1062 = vpop.permute.xlu0 %1061
        %1063 = vrot.lane.b32.xlu0 %v1055, 2
        %v1064 = vpop.permute.xlu0 %1063
        %1065 = vrot.lane.b32.xlu0 %v1056, 2
        %v1066 = vpop.permute.xlu0 %1065
        %vm1067 = vcmp.lt.s32.totalorder %v1040, 2
        %v1068 = vsel %vm1067, %v1064, %v1066
        %v1069 = vsel %vm1067, %v1062, %v1064
        %v1070 = vsel %vm1067, %v1060, %v1062
        %v1071 = vsel %vm1067, %v1058, %v1060
        %v1072 = vsel %vm1067, %v1066, %v1058
        %v1073 = vadd.f32 %v1047, %v1072
        %v1074 = vadd.f32 %v1048, %v1071
        %v1075 = vadd.f32 %v1049, %v1070
        %v1076 = vadd.f32 %v1050, %v1069
        %v1077 = vadd.f32 %v1051, %v1068
        %v1078 = vld [vmem:[#allocation2 + $0x78] sm:$0xff]
        %v1079 = vld [vmem:[#allocation2 + $0x80] sm:$0xff]
        %v1080 = vld [vmem:[#allocation2 + $0x88] sm:$0xff]
        %v1081 = vld [vmem:[#allocation2 + $0x90] sm:$0xff]
        %v1082 = vld [vmem:[#allocation2 + $0x98] sm:$0xff]
        %1083 = vrot.lane.b32.xlu0 %v1078, 3
        %v1084 = vpop.permute.xlu0 %1083
        %1085 = vrot.lane.b32.xlu0 %v1079, 3
        %v1086 = vpop.permute.xlu0 %1085
        %1087 = vrot.lane.b32.xlu0 %v1080, 3
        %v1088 = vpop.permute.xlu0 %1087
        %1089 = vrot.lane.b32.xlu0 %v1081, 3
        %v1090 = vpop.permute.xlu0 %1089
        %1091 = vrot.lane.b32.xlu0 %v1082, 3
        %v1092 = vpop.permute.xlu0 %1091
        %vm1093 = vcmp.lt.s32.totalorder %v1040, 3
        %v1094 = vsel %vm1093, %v1090, %v1092
        %v1095 = vsel %vm1093, %v1088, %v1090
        %v1096 = vsel %vm1093, %v1086, %v1088
        %v1097 = vsel %vm1093, %v1084, %v1086
        %v1098 = vsel %vm1093, %v1092, %v1084
        %v1099 = vadd.f32 %v1073, %v1098
        %v1100 = vadd.f32 %v1074, %v1097
        %v1101 = vadd.f32 %v1075, %v1096
        %v1102 = vadd.f32 %v1076, %v1095
        %v1103 = vadd.f32 %v1077, %v1094
        %v1104 = vld [vmem:[#allocation2 + $0xa0] sm:$0xff]
        %v1105 = vld [vmem:[#allocation2 + $0xa8] sm:$0xff]
        %v1106 = vld [vmem:[#allocation2 + $0xb0] sm:$0xff]
        %v1107 = vld [vmem:[#allocation2 + $0xb8] sm:$0xff]
        %v1108 = vld [vmem:[#allocation2 + $0xc0] sm:$0xff]
        %1109 = vrot.lane.b32.xlu0 %v1104, 4
        %v1110 = vpop.permute.xlu0 %1109
        %1111 = vrot.lane.b32.xlu0 %v1105, 4
        %v1112 = vpop.permute.xlu0 %1111
        %1113 = vrot.lane.b32.xlu0 %v1106, 4
        %v1114 = vpop.permute.xlu0 %1113
        %1115 = vrot.lane.b32.xlu0 %v1107, 4
        %v1116 = vpop.permute.xlu0 %1115
        %1117 = vrot.lane.b32.xlu0 %v1108, 4
        %v1118 = vpop.permute.xlu0 %1117
        %vm1119 = vcmp.lt.s32.totalorder %v1040, 4
        %v1120 = vsel %vm1119, %v1116, %v1118
        %v1121 = vsel %vm1119, %v1114, %v1116
        %v1122 = vsel %vm1119, %v1112, %v1114
        %v1123 = vsel %vm1119, %v1110, %v1112
        %v1124 = vsel %vm1119, %v1118, %v1110
        %v1125 = vadd.f32 %v1099, %v1124
        %v1126 = vadd.f32 %v1100, %v1123
        %v1127 = vadd.f32 %v1101, %v1122
        %v1128 = vadd.f32 %v1102, %v1121
        %v1129 = vadd.f32 %v1103, %v1120
        %v1130 = vld [vmem:[#allocation2 + $0xc8] sm:$0xff]
        %v1131 = vld [vmem:[#allocation2 + $0xd0] sm:$0xff]
        %v1132 = vld [vmem:[#allocation2 + $0xd8] sm:$0xff]
        %v1133 = vld [vmem:[#allocation2 + $0xe0] sm:$0xff]
        %v1134 = vld [vmem:[#allocation2 + $0xe8] sm:$0xff]
        %1135 = vrot.lane.b32.xlu0 %v1130, 5
        %v1136 = vpop.permute.xlu0 %1135
        %1137 = vrot.lane.b32.xlu0 %v1131, 5
        %v1138 = vpop.permute.xlu0 %1137
        %1139 = vrot.lane.b32.xlu0 %v1132, 5
        %v1140 = vpop.permute.xlu0 %1139
        %1141 = vrot.lane.b32.xlu0 %v1133, 5
        %v1142 = vpop.permute.xlu0 %1141
        %1143 = vrot.lane.b32.xlu0 %v1134, 5
        %v1144 = vpop.permute.xlu0 %1143
        %vm1145 = vcmp.lt.s32.totalorder %v1040, 5
        %v1146 = vsel %vm1145, %v1142, %v1144
        %v1147 = vsel %vm1145, %v1140, %v1142
        %v1148 = vsel %vm1145, %v1138, %v1140
        %v1149 = vsel %vm1145, %v1136, %v1138
        %v1150 = vsel %vm1145, %v1144, %v1136
        %v1151 = vadd.f32 %v1125, %v1150
        %v1152 = vadd.f32 %v1126, %v1149
        %v1153 = vadd.f32 %v1127, %v1148
        %v1154 = vadd.f32 %v1128, %v1147
        %v1155 = vadd.f32 %v1129, %v1146
        %v1156 = vld [vmem:[#allocation2 + $0xf0] sm:$0xff]
        %v1157 = vld [vmem:[#allocation2 + $0xf8] sm:$0xff]
        %v1158 = vld [vmem:[#allocation2 + $0x100] sm:$0xff]
        %v1159 = vld [vmem:[#allocation2 + $0x108] sm:$0xff]
        %v1160 = vld [vmem:[#allocation2 + $0x110] sm:$0xff]
        %1161 = vrot.lane.b32.xlu0 %v1156, 6
        %v1162 = vpop.permute.xlu0 %1161
        %1163 = vrot.lane.b32.xlu0 %v1157, 6
        %v1164 = vpop.permute.xlu0 %1163
        %1165 = vrot.lane.b32.xlu0 %v1158, 6
        %v1166 = vpop.permute.xlu0 %1165
        %1167 = vrot.lane.b32.xlu0 %v1159, 6
        %v1168 = vpop.permute.xlu0 %1167
        %1169 = vrot.lane.b32.xlu0 %v1160, 6
        %v1170 = vpop.permute.xlu0 %1169
        %vm1171 = vcmp.lt.s32.totalorder %v1040, 6
        %v1172 = vsel %vm1171, %v1168, %v1170
        %v1173 = vsel %vm1171, %v1166, %v1168
        %v1174 = vsel %vm1171, %v1164, %v1166
        %v1175 = vsel %vm1171, %v1162, %v1164
        %v1176 = vsel %vm1171, %v1170, %v1162
        %v1177 = vadd.f32 %v1151, %v1176
        %v1178 = vadd.f32 %v1152, %v1175
        %v1179 = vadd.f32 %v1153, %v1174
        %v1180 = vadd.f32 %v1154, %v1173
        %v1181 = vadd.f32 %v1155, %v1172
        %v1182 = vld [vmem:[#allocation2 + $0x118] sm:$0xff]
        %v1183 = vld [vmem:[#allocation2 + $0x120] sm:$0xff]
        %v1184 = vld [vmem:[#allocation2 + $0x128] sm:$0xff]
        %v1185 = vld [vmem:[#allocation2 + $0x130] sm:$0xff]
        %v1186 = vld [vmem:[#allocation2 + $0x138] sm:$0xff]
        %1187 = vrot.lane.b32.xlu0 %v1182, 7
        %v1188 = vpop.permute.xlu0 %1187
        %1189 = vrot.lane.b32.xlu0 %v1183, 7
        %v1190 = vpop.permute.xlu0 %1189
        %1191 = vrot.lane.b32.xlu0 %v1184, 7
        %v1192 = vpop.permute.xlu0 %1191
        %1193 = vrot.lane.b32.xlu0 %v1185, 7
        %v1194 = vpop.permute.xlu0 %1193
        %1195 = vrot.lane.b32.xlu0 %v1186, 7
        %v1196 = vpop.permute.xlu0 %1195
        %vm1197 = vcmp.lt.s32.totalorder %v1040, 7
        %v1198 = vsel %vm1197, %v1194, %v1196
        %v1199 = vsel %vm1197, %v1192, %v1194
        %v1200 = vsel %vm1197, %v1190, %v1192
        %v1201 = vsel %vm1197, %v1188, %v1190
        %v1202 = vsel %vm1197, %v1196, %v1188
        %v1203 = vadd.f32 %v1177, %v1202
        %v1204 = vadd.f32 %v1178, %v1201
        %v1205 = vadd.f32 %v1179, %v1200
        %v1206 = vadd.f32 %v1180, %v1199
        %v1207 = vadd.f32 %v1181, %v1198
        %v1213 = vrot.slane %v1203, 1
        %v1214 = vrot.slane %v1204, 1
        %v1215 = vrot.slane %v1205, 1
        %v1216 = vrot.slane %v1206, 1
        %v1217 = vrot.slane %v1207, 1
        %1223 = vrot.lane.b32.xlu0 %v1213, 23
        %v1224 = vpop.permute.xlu0 %1223
        %1225 = vrot.lane.b32.xlu0 %v1214, 23
        %v1226 = vpop.permute.xlu0 %1225
        %1227 = vrot.lane.b32.xlu0 %v1215, 23
        %v1228 = vpop.permute.xlu0 %1227
        %1229 = vrot.lane.b32.xlu0 %v1216, 23
        %v1230 = vpop.permute.xlu0 %1229
        %1231 = vrot.lane.b32.xlu0 %v1217, 23
        %v1232 = vpop.permute.xlu0 %1231
        %vm1233 = vcmp.lt.s32.totalorder %v1040, 23
        %v1234 = vsel %vm1233, %v1230, %v1232
        %v1235 = vsel %vm1233, %v1228, %v1230
        %v1236 = vsel %vm1233, %v1226, %v1228
        %v1237 = vsel %vm1233, %v1224, %v1226
        %v1238 = vsel %vm1233, %v1232, %v1224
        %v1239 = vadd.f32 %v1203, %v1238
        %v1240 = vadd.f32 %v1204, %v1237
        %v1241 = vadd.f32 %v1205, %v1236
        %v1242 = vadd.f32 %v1206, %v1235
        %v1243 = vadd.f32 %v1207, %v1234
        %v1244 = vrot.slane %v1203, 2
        %v1245 = vrot.slane %v1204, 2
        %v1246 = vrot.slane %v1205, 2
        %v1247 = vrot.slane %v1206, 2
        %v1248 = vrot.slane %v1207, 2
        %1254 = vrot.lane.b32.xlu0 %v1244, 46
        %v1255 = vpop.permute.xlu0 %1254
        %1256 = vrot.lane.b32.xlu0 %v1245, 46
        %v1257 = vpop.permute.xlu0 %1256
        %1258 = vrot.lane.b32.xlu0 %v1246, 46
        %v1259 = vpop.permute.xlu0 %1258
        %1260 = vrot.lane.b32.xlu0 %v1247, 46
        %v1261 = vpop.permute.xlu0 %1260
        %1262 = vrot.lane.b32.xlu0 %v1248, 46
        %v1263 = vpop.permute.xlu0 %1262
        %vm1264 = vcmp.lt.s32.totalorder %v1040, 46
        %v1265 = vsel %vm1264, %v1261, %v1263
        %v1266 = vsel %vm1264, %v1259, %v1261
        %v1267 = vsel %vm1264, %v1257, %v1259
        %v1268 = vsel %vm1264, %v1255, %v1257
        %v1269 = vsel %vm1264, %v1263, %v1255
        %v1270 = vadd.f32 %v1239, %v1269
        %v1271 = vadd.f32 %v1240, %v1268
        %v1272 = vadd.f32 %v1241, %v1267
        %v1273 = vadd.f32 %v1242, %v1266
        %v1274 = vadd.f32 %v1243, %v1265
        %v1275 = vrot.slane %v1203, 3
        %v1276 = vrot.slane %v1204, 3
        %v1277 = vrot.slane %v1205, 3
        %v1278 = vrot.slane %v1206, 3
        %v1279 = vrot.slane %v1207, 3
        %1285 = vrot.lane.b32.xlu0 %v1275, 69
        %v1286 = vpop.permute.xlu0 %1285
        %1287 = vrot.lane.b32.xlu0 %v1276, 69
        %v1288 = vpop.permute.xlu0 %1287
        %1289 = vrot.lane.b32.xlu0 %v1277, 69
        %v1290 = vpop.permute.xlu0 %1289
        %1291 = vrot.lane.b32.xlu0 %v1278, 69
        %v1292 = vpop.permute.xlu0 %1291
        %1293 = vrot.lane.b32.xlu0 %v1279, 69
        %v1294 = vpop.permute.xlu0 %1293
        %vm1295 = vcmp.lt.s32.totalorder %v1040, 69
        %v1296 = vsel %vm1295, %v1292, %v1294
        %v1297 = vsel %vm1295, %v1290, %v1292
        %v1298 = vsel %vm1295, %v1288, %v1290
        %v1299 = vsel %vm1295, %v1286, %v1288
        %v1300 = vsel %vm1295, %v1294, %v1286
        %v1301 = vadd.f32 %v1270, %v1300
        %v1302 = vadd.f32 %v1271, %v1299
        %v1303 = vadd.f32 %v1272, %v1298
        %v1304 = vadd.f32 %v1273, %v1297
        %v1305 = vadd.f32 %v1274, %v1296
        %v1306 = vrot.slane %v1203, 4
        %v1307 = vrot.slane %v1204, 4
        %v1308 = vrot.slane %v1205, 4
        %v1309 = vrot.slane %v1206, 4
        %v1310 = vrot.slane %v1207, 4
        %1316 = vrot.lane.b32.xlu0 %v1306, 92
        %v1317 = vpop.permute.xlu0 %1316
        %1318 = vrot.lane.b32.xlu0 %v1307, 92
        %v1319 = vpop.permute.xlu0 %1318
        %1320 = vrot.lane.b32.xlu0 %v1308, 92
        %v1321 = vpop.permute.xlu0 %1320
        %1322 = vrot.lane.b32.xlu0 %v1309, 92
        %v1323 = vpop.permute.xlu0 %1322
        %1324 = vrot.lane.b32.xlu0 %v1310, 92
        %v1325 = vpop.permute.xlu0 %1324
        %vm1326 = vcmp.lt.s32.totalorder %v1040, 92
        %v1327 = vsel %vm1326, %v1323, %v1325
        %v1328 = vsel %vm1326, %v1321, %v1323
        %v1329 = vsel %vm1326, %v1319, %v1321
        %v1330 = vsel %vm1326, %v1317, %v1319
        %v1331 = vsel %vm1326, %v1325, %v1317
        %v1332 = vadd.f32 %v1301, %v1331
        %v1333 = vadd.f32 %v1302, %v1330
        %v1334 = vadd.f32 %v1303, %v1329
        %v1335 = vadd.f32 %v1304, %v1328
        %v1336 = vadd.f32 %v1305, %v1327
        %v1337 = vrot.slane %v1203, 5
        %v1338 = vrot.slane %v1204, 5
        %v1339 = vrot.slane %v1205, 5
        %v1340 = vrot.slane %v1206, 5
        %v1341 = vrot.slane %v1207, 5
        %1347 = vrot.lane.b32.xlu0 %v1337, 115
        %v1348 = vpop.permute.xlu0 %1347
        %1349 = vrot.lane.b32.xlu0 %v1338, 115
        %v1350 = vpop.permute.xlu0 %1349
        %1351 = vrot.lane.b32.xlu0 %v1339, 115
        %v1352 = vpop.permute.xlu0 %1351
        %1353 = vrot.lane.b32.xlu0 %v1340, 115
        %v1354 = vpop.permute.xlu0 %1353
        %1355 = vrot.lane.b32.xlu0 %v1341, 115
        %v1356 = vpop.permute.xlu0 %1355
        %vm1357 = vcmp.lt.s32.totalorder %v1040, 115
        %v1358 = vsel %vm1357, %v1354, %v1356
        %v1359 = vsel %vm1357, %v1352, %v1354
        %v1360 = vsel %vm1357, %v1350, %v1352
        %v1361 = vsel %vm1357, %v1348, %v1350
        %v1362 = vsel %vm1357, %v1356, %v1348
        %v1363 = vadd.f32 %v1332, %v1362
        %v1364 = vadd.f32 %v1333, %v1361
        %v1365 = vadd.f32 %v1334, %v1360
        %v1366 = vadd.f32 %v1335, %v1359
        %v1367 = vadd.f32 %v1336, %v1358
        %v1368 = vrot.slane %v1203, 6
        %v1369 = vrot.slane %v1204, 6
        %v1370 = vrot.slane %v1205, 6
        %v1371 = vrot.slane %v1206, 6
        %v1372 = vrot.slane %v1207, 6
        %1378 = vrot.lane.b32.xlu0 %v1368, 10
        %v1379 = vpop.permute.xlu0 %1378
        %1380 = vrot.lane.b32.xlu0 %v1369, 10
        %v1381 = vpop.permute.xlu0 %1380
        %1382 = vrot.lane.b32.xlu0 %v1370, 10
        %v1383 = vpop.permute.xlu0 %1382
        %1384 = vrot.lane.b32.xlu0 %v1371, 10
        %v1385 = vpop.permute.xlu0 %1384
        %1386 = vrot.lane.b32.xlu0 %v1372, 10
        %v1387 = vpop.permute.xlu0 %1386
        %vm1388 = vcmp.lt.s32.totalorder %v1040, 10
        %v1389 = vsel %vm1388, %v1385, %v1387
        %v1390 = vsel %vm1388, %v1383, %v1385
        %v1391 = vsel %vm1388, %v1381, %v1383
        %v1392 = vsel %vm1388, %v1379, %v1381
        %v1393 = vsel %vm1388, %v1387, %v1379
        %v1394 = vadd.f32 %v1363, %v1389
        %v1395 = vadd.f32 %v1364, %v1393
        %v1396 = vadd.f32 %v1365, %v1392
        %v1397 = vadd.f32 %v1366, %v1391
        %v1398 = vadd.f32 %v1367, %v1390
        %v1399 = vrot.slane %v1203, 7
        %v1400 = vrot.slane %v1204, 7
        %v1401 = vrot.slane %v1205, 7
        %v1402 = vrot.slane %v1206, 7
        %v1403 = vrot.slane %v1207, 7
        %1409 = vrot.lane.b32.xlu0 %v1399, 33
        %v1410 = vpop.permute.xlu0 %1409
        %1411 = vrot.lane.b32.xlu0 %v1400, 33
        %v1412 = vpop.permute.xlu0 %1411
        %1413 = vrot.lane.b32.xlu0 %v1401, 33
        %v1414 = vpop.permute.xlu0 %1413
        %1415 = vrot.lane.b32.xlu0 %v1402, 33
        %v1416 = vpop.permute.xlu0 %1415
        %1417 = vrot.lane.b32.xlu0 %v1403, 33
        %v1418 = vpop.permute.xlu0 %1417
        %vm1419 = vcmp.lt.s32.totalorder %v1040, 33
        %v1420 = vsel %vm1419, %v1416, %v1418
        %v1421 = vsel %vm1419, %v1414, %v1416
        %v1422 = vsel %vm1419, %v1412, %v1414
        %v1423 = vsel %vm1419, %v1410, %v1412
        %v1424 = vsel %vm1419, %v1418, %v1410
        %v1425 = vadd.f32 %v1394, %v1420
        %v1426 = vadd.f32 %v1395, %v1424
        %v1427 = vadd.f32 %v1396, %v1423
        %v1428 = vadd.f32 %v1397, %v1422
        %v1429 = vadd.f32 %v1398, %v1421
        %vm1430 = vcmp.gt.f32.partialorder %v1425, 0.0
        %vm1431 = vcmp.gt.f32.partialorder %v1426, 0.0
        %vm1432 = vcmp.gt.f32.partialorder %v1427, 0.0
        %vm1433 = vcmp.gt.f32.partialorder %v1428, 0.0
        %vm1434 = vcmp.gt.f32.partialorder %v1429, 0.0
        %v1435 = vmul.f32 %v1425, 1.648397
        %v1436 = vmul.f32 %v1426, 1.648397
        %v1437 = vmul.f32 %v1427, 1.648397
        %v1438 = vmul.f32 %v1428, 1.648397
        %v1439 = vmul.f32 %v1429, 1.648397
        %v1440 = vsel %vm1430, %v1425, %v1435
        %v1441 = vsel %vm1431, %v1426, %v1436
        %v1442 = vsel %vm1432, %v1427, %v1437
        %v1443 = vsel %vm1433, %v1428, %v1438
        %v1444 = vsel %vm1434, %v1429, %v1439
        %v1445 = vmax.f32 %v1440, 0.0
        %v1446 = vmax.f32 %v1441, 0.0
        %v1447 = vmax.f32 %v1442, 0.0
        %v1448 = vmax.f32 %v1443, 0.0
        %v1449 = vmax.f32 %v1444, 0.0
        %v1450 = vmin.f32 %v1445, 6.0
        %v1451 = vmin.f32 %v1446, 6.0
        %v1452 = vmin.f32 %v1447, 6.0
        %v1453 = vmin.f32 %v1448, 6.0
        %v1454 = vmin.f32 %v1449, 6.0
        %v1460 = vrot.slane %v1451, 7
        %v1461 = vrot.slane %v1452, 6
        %v1462 = vrot.slane %v1453, 5
        %v1463 = vrot.slane %v1454, 4
        %vm1464 = vcmask 1040384
        %v1465 = vsel %vm1464, %v1450, %v1460
        %vm1466 = vcmask 1041408
        %v1467 = vsel %vm1466, %v1465, %v1461
        %vm1468 = vcmask 1043459
        %v1469 = vsel %vm1468, %v1462, %v1463
        %vm1470 = vcmask 1042432
        %v1471 = vsel %vm1470, %v1467, %v1469
        %v1473 = vlaneseq
        %vm1474 = vcmp.ge.s32.totalorder %v1473, 0
        %vm1475 = vcmp.lt.s32.totalorder %v1473, 640
        %vm1476 = vmand %vm1474, %vm1475
        %1477 = vst.msk [vmem:[%s180] sm:$0x1f] %vm1476, %v1471
        %s1478 = sand.u32 %s75, 1
        %s1479 = scalar_lea.sflag [#allocation5], %s1478
        %s1480 = sand.u32 %s75, 1
        %s1481 = smul.addr %s1480, 5
        %s1482 = scalar_lea.vmem [#allocation8], %s1481
        // Predicated region
        $region37: #{tpu_custom_call.1} parent=27 // pred_check
          %p1483 = pneg %p85
        $region38: #{tpu_custom_call.1} parent=27 // pred_check_branch
          %1485 = sbr.rel (%p1483) target = $region40
        $region39: #{tpu_custom_call.1} parent=27 // pred_region
          %1487 = vsyncadd %s1479, 0
          %s1488 = smul.addr %s20, 5
          %s1489 = scalar_lea.hbm %s2, %s1488
          %s1491 = sshll.u32 %s1482, 4
          %s1492 = int_to_ptr.vmem [resolvable:$true] %s1491
          %s1493 = sshll.u32 %s1489, 4
          %s1494 = int_to_ptr.hbm [resolvable:$true] %s1493
          %1496 = dma.vmem_to_hbm [thread:$0]  %s1492, 80, %s1494, %s1479
        $region40: #{tpu_custom_call.1} parent=27 // pred_fallthru
          _
      $region28: #{tpu_custom_call.1} parent=5 // pred_fallthru
        _
      %p1497 = scmp.le.s32.totalorder 2, %s15
      // Predicated region
      $region41: #{tpu_custom_call.1} parent=5 // pred_check
        %p1498 = pneg %p1497
      $region42: #{tpu_custom_call.1} parent=5 // pred_check_branch
        %1500 = sbr.rel (%p1498) target = $region44
      $region43: #{tpu_custom_call.1} parent=5 // pred_region
        %s1501 = ssub.s32 %s15, 2
        // Predicated region
        $region45: #{tpu_custom_call.1} parent=43 // pred_check
          %p1502 = pneg %p91
        $region46: #{tpu_custom_call.1} parent=43 // pred_check_branch
          %1504 = sbr.rel (%p1502) target = $region48
        $region47: #{tpu_custom_call.1} parent=43 // pred_region
          %s1505 = sand.u32 %s76, 1
          %s1506 = scalar_lea.sflag [#allocation5], %s1505
          %s1507 = sand.u32 %s76, 1
          %s1508 = smul.addr %s1507, 5
          %s1509 = scalar_lea.vmem [#allocation8], %s1508
          %1511 = dma.done %s1506, 80
        $region48: #{tpu_custom_call.1} parent=43 // pred_fallthru
          _
      $region44: #{tpu_custom_call.1} parent=5 // pred_fallthru
        _
    $region6: #{tpu_custom_call.1} parent=1 // loop_footer
      %s19 = sadd.s32 1, %s15
    $region7: #{tpu_custom_call.1} parent=1 // loop_footer_branch
      %14 = sbr.rel target = $region3
    $region8: #{tpu_custom_call.1} parent=1 // loop_exit
      _
    %1512 = vsyncpa [#allocation4], 1
    %s1513 = scalar_lea.sflag [#allocation4], 1
    %1514 = vsyncpa %s1513, 1
    %1515 = vsyncpa [#allocation7], 1
    %1516 = vsyncpa [#allocation5], 1
    %s1517 = scalar_lea.sflag [#allocation5], 1
    %1518 = vsyncpa %s1517, 1

</llo_original>
